<compile_context>
chip_gen: v5e
topology: v5e:2x2
jax: 0.10.0
libtpu: 0.0.40
codegen_flags: <defaults>
</compile_context>

<pallas_src>
import functools

import jax
import jax.numpy as jnp
from jax.experimental import pallas as pl
from jax.experimental.pallas import tpu as pltpu

_MiB = 1024 * 1024


def _round_up(x, m):
    return ((x + m - 1) // m) * m


def _cdiv(a, b):
    return -(-a // b)


def _chip_profile():
    """Returns (vmem_capacity_bytes, two_tensorcores, tm_target, tk_cap)."""
    try:
        kind = jax.devices()[0].device_kind.lower()
    except Exception:
        kind = ""
    try:
        vmem_cap = int(pltpu.get_tpu_info().vmem_capacity_bytes)
    except Exception:
        vmem_cap = 64 * _MiB  # conservative fallback (v7x-sized VMEM)
    two_tc = "7" in kind  # v7x: 2 TensorCores per chip share the grid's parallel axes
    if "v5e" in kind or ("v5" in kind and "lite" in kind):
        tm_target, tk_cap = 256, 512      # ~240 F/B crossover: tm=256 already at roofline
    elif "v6" in kind:
        tm_target, tk_cap = 768, 1024     # ~650 F/B crossover needs bigger row tiles
    elif two_tc:
        tm_target, tk_cap = 384, 512      # ~310 F/B crossover, only 64 MiB VMEM
    else:
        tm_target, tk_cap = 512, 1024     # unknown chip: moderate defaults
    return vmem_cap, two_tc, tm_target, tk_cap


def _row_tiles(M, tm_target, two_tc):
    """Ceil-split rows into n_i tiles of tm_eff (multiple of 8), minimal padding."""
    M8 = _round_up(M, 8)
    n_i = max(1, _cdiv(M8, tm_target))
    if two_tc and n_i == 1 and M8 >= 16:
        n_i = 2  # keep both TensorCores busy on the "parallel" axis
    tm_eff = _round_up(_cdiv(M8, n_i), 8)
    return n_i, tm_eff, n_i * tm_eff


def _ff_tile_candidates(d_ff, cap):
    """d_ff tile candidates (largest first): multiples of 128 dividing d_ff, <= cap."""
    cands = []
    if d_ff <= cap:
        cands.append(d_ff)
    start = min(cap, d_ff)
    start -= start % 128
    for t in range(start, 127, -128):
        if d_ff % t == 0 and t not in cands:
            cands.append(t)
    if not cands:
        cands.append(d_ff)
    return cands


def _fits_vmem(tk, resident, tm, d_model, d_ff, x_item, w_item, budget):
    w_cols = d_ff if resident else tk
    w_bytes = 2 * d_model * w_cols * w_item * 2   # W1 + W2 blocks, double-buffered
    xo_bytes = 2 * tm * d_model * x_item * 2      # x + out blocks, double-buffered
    acc_bytes = tm * d_model * 4                  # f32 accumulator scratch
    h_bytes = tm * tk * 4 * 2                     # f32 intermediate (+slack)
    bias_bytes = (d_ff + d_model) * 4 * 2
    return w_bytes + xo_bytes + acc_bytes + h_bytes + bias_bytes <= budget


def _ffn_kernel(x_ref, w1_ref, b1_ref, w2_ref, b2_ref, o_ref, acc_ref, *, act_dtype):
    """One (row-tile, d_ff-tile) step of: out = relu(x @ W1 + b1) @ W2 + b2."""
    k = pl.program_id(1)

    @pl.when(k == 0)
    def _init():
        # Fold b2 into the accumulator init (saves an add in the store epilogue).
        acc_ref[...] = jnp.broadcast_to(b2_ref[...].astype(jnp.float32), acc_ref.shape)

    # linear1 slice (d_ff tile) + bias + relu; f32 accumulation on the MXU.
    h = jnp.dot(x_ref[...], w1_ref[...], preferred_element_type=jnp.float32)
    h = jnp.maximum(h + b1_ref[pl.ds(k, 1), :], 0.0)

    # dropout: identity (inference).  TODO(synk): prng-based mask for training mode.

    # Partial linear2 contribution; explicit activation-dtype cast (not W2's dtype).
    acc_ref[...] += jnp.dot(h.astype(act_dtype), w2_ref[...],
                            preferred_element_type=jnp.float32)

    @pl.when(k == pl.num_programs(1) - 1)
    def _store():
        o_ref[...] = acc_ref[...].astype(o_ref.dtype)


@jax.jit
def feed_forward(x, w1, b1, w2, b2):
    """x: [batch, seq, d_model]. w1: [d_model, d_ff], w2: [d_ff, d_model]."""
    batch, seq, d_model = x.shape
    d_ff = w1.shape[1]
    M = batch * seq

    x_item = jnp.dtype(x.dtype).itemsize
    w_item = jnp.dtype(w1.dtype).itemsize

    vmem_cap, two_tc, tm_target, tk_cap = _chip_profile()
    vmem_limit = max(32 * _MiB, min(vmem_cap - 16 * _MiB, int(vmem_cap * 0.85)))
    tile_budget = int(vmem_limit * 0.9)

    # Derive (n_i, tm_eff) and (tk_ff, resident) from the VMEM budget.
    resident = False
    tk_ff = None
    while True:
        n_i, tm_eff, M_pad = _row_tiles(M, tm_target, two_tc)
        cands = _ff_tile_candidates(d_ff, tk_cap)
        if _fits_vmem(d_ff, True, tm_eff, d_model, d_ff, x_item, w_item, tile_budget):
            resident, tk_ff = True, d_ff       # weights DMA'd once, stay in VMEM
            break
        tk_ff = next((t for t in cands
                      if _fits_vmem(t, False, tm_eff, d_model, d_ff,
                                    x_item, w_item, tile_budget)), None)
        if tk_ff is not None or tm_target <= 64:
            if tk_ff is None:
                tk_ff = cands[-1]              # smallest tile; let Mosaic cope
            break
        tm_target = max(64, tm_target // 2)    # shrink row tile and retry

    nk = d_ff // tk_ff

    x2d = x.reshape(M, d_model)
    if M_pad != M:
        x2d = jnp.pad(x2d, ((0, M_pad - M), (0, 0)))
    b1_2d = b1.reshape(nk, tk_ff)              # row k = bias slice for d_ff tile k
    b2_2d = b2.reshape(1, d_model)

    grid = (n_i, nk)

    if resident:
        w1_spec = pl.BlockSpec((d_model, d_ff), lambda i, k: (0, 0))    # DMA'd once
        w2_spec = pl.BlockSpec((d_ff, d_model), lambda i, k: (0, 0))    # DMA'd once
    else:
        w1_spec = pl.BlockSpec((d_model, tk_ff), lambda i, k: (0, k))   # streamed
        w2_spec = pl.BlockSpec((tk_ff, d_model), lambda i, k: (k, 0))   # streamed

    w_bytes = (w1.size + w2.size) * w_item
    bytes_accessed = (x2d.size * x_item
                      + (1 if resident else n_i) * w_bytes               # re-streaming
                      + (b1.size + b2.size) * 4
                      + M_pad * d_model * x_item)
    cost = pl.CostEstimate(flops=4 * M_pad * d_model * d_ff,             # two matmuls
                           transcendentals=0,
                           bytes_accessed=bytes_accessed)

    out2d = pl.pallas_call(
        functools.partial(_ffn_kernel, act_dtype=x.dtype),
        out_shape=jax.ShapeDtypeStruct((M_pad, d_model), x.dtype),
        grid_spec=pltpu.PrefetchScalarGridSpec(
            num_scalar_prefetch=0,
            grid=grid,
            in_specs=[
                pl.BlockSpec((tm_eff, d_model), lambda i, k: (i, 0)),    # x row tile
                w1_spec,
                pl.BlockSpec((nk, tk_ff), lambda i, k: (0, 0)),          # b1, resident
                w2_spec,
                pl.BlockSpec((1, d_model), lambda i, k: (0, 0)),         # b2, resident
            ],
            out_specs=pl.BlockSpec((tm_eff, d_model), lambda i, k: (i, 0)),
            scratch_shapes=[pltpu.VMEM((tm_eff, d_model), jnp.float32)],
        ),
        compiler_params=pltpu.CompilerParams(
            dimension_semantics=("parallel", "arbitrary"),
            vmem_limit_bytes=vmem_limit),
        cost_estimate=cost,
    )(x2d, w1, b1_2d, w2, b2_2d)

    if M_pad != M:
        out2d = out2d[:M]
    return out2d.reshape(batch, seq, d_model)


def init_params(key, d_model, d_ff, w_dtype=jnp.bfloat16, b_dtype=jnp.float32):
    """Deterministic init mirroring nn.Linear shapes (PyTorch weight: (out, in))."""
    k1, k2, k3, k4 = jax.random.split(key, 4)
    bound1 = 1.0 / (d_model ** 0.5)
    bound2 = 1.0 / (d_ff ** 0.5)
    w1_pt = jax.random.uniform(k1, (d_ff, d_model), jnp.float32, -bound1, bound1)
    b1 = jax.random.uniform(k2, (d_ff,), b_dtype, -bound1, bound1)
    w2_pt = jax.random.uniform(k3, (d_model, d_ff), jnp.float32, -bound2, bound2)
    b2 = jax.random.uniform(k4, (d_model,), b_dtype, -bound2, bound2)
    return (w1_pt.T.astype(w_dtype), b1, w2_pt.T.astype(w_dtype), b2)


if __name__ == "__main__":
    # Small but lane-dense shapes: d_model=128 keeps output stores unmasked.
    batch, seq, d_model, d_ff = 2, 8, 128, 2048

    key = jax.random.PRNGKey(0)
    kx, kp = jax.random.split(key)
    x = jax.random.normal(kx, (batch, seq, d_model), jnp.float32).astype(jnp.bfloat16)
    w1, b1, w2, b2 = init_params(kp, d_model, d_ff)

    out = jax.block_until_ready(feed_forward(x, w1, b1, w2, b2))

    # Cross-check against a plain-JAX reference (same bf16 intermediate cast).
    xf = x.astype(jnp.float32)
    h_ref = jnp.maximum(xf @ w1.astype(jnp.float32) + b1, 0.0).astype(jnp.bfloat16)
    ref = h_ref.astype(jnp.float32) @ w2.astype(jnp.float32) + b2

    assert out.shape == (batch, seq, d_model)
    assert out.dtype == x.dtype
    max_err = jnp.max(jnp.abs(out.astype(jnp.float32) - ref))
    assert max_err < 5e-2, f"max abs err {max_err}"

    print("KERNEL_OK")
</pallas_src>

<mosaic_0001>
module attributes {stable_mosaic.version = 11 : i64} {
  func.func @_ffn_kernel(%arg0: i32, %arg1: i32, %arg2: memref<16x128xbf16, #tpu.memory_space<vmem>>, %arg3: memref<128x2048xbf16, #tpu.memory_space<vmem>>, %arg4: memref<1x2048xf32, #tpu.memory_space<vmem>>, %arg5: memref<2048x128xbf16, #tpu.memory_space<vmem>>, %arg6: memref<1x128xf32, #tpu.memory_space<vmem>>, %arg7: memref<16x128xbf16, #tpu.memory_space<vmem>>, %arg8: memref<16x128xf32, #tpu.memory_space<vmem>>) attributes {dimension_semantics = [#tpu.dimension_semantics<parallel>, #tpu.dimension_semantics<arbitrary>], iteration_bounds = array<i64: 1, 1>, scalar_prefetch = 0 : i64, scratch_operands = 1 : i64, tpu.core_type = #tpu.core_type<tc>, window_params = [{transform_indices = @transform_0, window_bounds = array<i64: 16, 128>}, {pipeline_mode = #tpu.pipeline_mode<synchronous>, transform_indices = @transform_1, window_bounds = array<i64: 128, 2048>}, {pipeline_mode = #tpu.pipeline_mode<synchronous>, transform_indices = @transform_2, window_bounds = array<i64: 1, 2048>}, {pipeline_mode = #tpu.pipeline_mode<synchronous>, transform_indices = @transform_3, window_bounds = array<i64: 2048, 128>}, {pipeline_mode = #tpu.pipeline_mode<synchronous>, transform_indices = @transform_4, window_bounds = array<i64: 1, 128>}, {transform_indices = @transform_5, window_bounds = array<i64: 16, 128>}]} {
    %c0_i32 = arith.constant 0 : i32
    %0 = arith.cmpi eq, %arg1, %c0_i32 : i32
    %1 = arith.extui %0 : i1 to i32
    %c0_i32_0 = arith.constant 0 : i32
    %2 = arith.cmpi ne, %1, %c0_i32_0 : i32
    scf.if %2 {
      %c0_15 = arith.constant 0 : index
      %c0_16 = arith.constant 0 : index
      %21 = vector.load %arg6[%c0_15, %c0_16] : memref<1x128xf32, #tpu.memory_space<vmem>>, vector<1x128xf32>
      %22 = vector.shape_cast %21 : vector<1x128xf32> to vector<1x128xf32>
      %23 = vector.broadcast %22 : vector<1x128xf32> to vector<16x128xf32>
      %c0_17 = arith.constant 0 : index
      %c0_18 = arith.constant 0 : index
      %24 = vector.load %arg8[%c0_17, %c0_18] : memref<16x128xf32, #tpu.memory_space<vmem>>, vector<16x128xf32>
      tpu.vector_store %arg8[%c0_17, %c0_18], %23 {strides = array<i32>} : memref<16x128xf32, #tpu.memory_space<vmem>>, vector<16x128xf32>,
    } else {
    }
    %c0 = arith.constant 0 : index
    %c0_1 = arith.constant 0 : index
    %3 = vector.load %arg2[%c0, %c0_1] : memref<16x128xbf16, #tpu.memory_space<vmem>>, vector<16x128xbf16>
    %c0_2 = arith.constant 0 : index
    %c0_3 = arith.constant 0 : index
    %4 = vector.load %arg3[%c0_2, %c0_3] : memref<128x2048xbf16, #tpu.memory_space<vmem>>, vector<128x2048xbf16>
    %cst = arith.constant dense<0.000000e+00> : vector<16x2048xf32>
    %5 = tpu.matmul %3, %4, %cst {dimension_numbers = #tpu.dot_dimension_numbers<[1], [0], [0], [1], [0, 0, 1, 1], [], []>} : vector<16x128xbf16>, vector<128x2048xbf16>, vector<16x2048xf32> -> vector<16x2048xf32>
    %6 = arith.index_cast %arg1 : i32 to index
    %c0_4 = arith.constant 0 : index
    %7 = vector.load %arg4[%6, %c0_4] : memref<1x2048xf32, #tpu.memory_space<vmem>>, vector<1x2048xf32>
    %8 = vector.broadcast %7 : vector<1x2048xf32> to vector<16x2048xf32>
    %9 = arith.addf %5, %8 : vector<16x2048xf32>
    %cst_5 = arith.constant 0.000000e+00 : f32
    %10 = vector.broadcast %cst_5 : f32 to vector<16x2048xf32>
    %11 = arith.maximumf %9, %10 : vector<16x2048xf32>
    %c0_6 = arith.constant 0 : index
    %c0_7 = arith.constant 0 : index
    %12 = vector.load %arg8[%c0_6, %c0_7] : memref<16x128xf32, #tpu.memory_space<vmem>>, vector<16x128xf32>
    %13 = arith.truncf %11 : vector<16x2048xf32> to vector<16x2048xbf16>
    %c0_8 = arith.constant 0 : index
    %c0_9 = arith.constant 0 : index
    %14 = vector.load %arg5[%c0_8, %c0_9] : memref<2048x128xbf16, #tpu.memory_space<vmem>>, vector<2048x128xbf16>
    %cst_10 = arith.constant dense<0.000000e+00> : vector<16x128xf32>
    %15 = tpu.matmul %13, %14, %cst_10 {dimension_numbers = #tpu.dot_dimension_numbers<[1], [0], [0], [1], [0, 0, 1, 1], [], []>} : vector<16x2048xbf16>, vector<2048x128xbf16>, vector<16x128xf32> -> vector<16x128xf32>
    %16 = arith.addf %12, %15 : vector<16x128xf32>
    %c0_11 = arith.constant 0 : index
    %c0_12 = arith.constant 0 : index
    %17 = vector.load %arg8[%c0_11, %c0_12] : memref<16x128xf32, #tpu.memory_space<vmem>>, vector<16x128xf32>
    tpu.vector_store %arg8[%c0_11, %c0_12], %16 {strides = array<i32>} : memref<16x128xf32, #tpu.memory_space<vmem>>, vector<16x128xf32>,
    %c0_i32_13 = arith.constant 0 : i32
    %18 = arith.cmpi eq, %arg1, %c0_i32_13 : i32
    %19 = arith.extui %18 : i1 to i32
    %c0_i32_14 = arith.constant 0 : i32
    %20 = arith.cmpi ne, %19, %c0_i32_14 : i32
    scf.if %20 {
      %c0_15 = arith.constant 0 : index
      %c0_16 = arith.constant 0 : index
      %21 = vector.load %arg8[%c0_15, %c0_16] : memref<16x128xf32, #tpu.memory_space<vmem>>, vector<16x128xf32>
      %22 = arith.truncf %21 : vector<16x128xf32> to vector<16x128xbf16>
      %c0_17 = arith.constant 0 : index
      %c0_18 = arith.constant 0 : index
      %23 = vector.load %arg7[%c0_17, %c0_18] : memref<16x128xbf16, #tpu.memory_space<vmem>>, vector<16x128xbf16>
      tpu.vector_store %arg7[%c0_17, %c0_18], %22 {strides = array<i32>} : memref<16x128xbf16, #tpu.memory_space<vmem>>, vector<16x128xbf16>,
    } else {
    }
    return
  }
  func.func @transform_0(%arg0: i32, %arg1: i32) -> (i32, i32) {
    %c0_i32 = arith.constant 0 : i32
    %c0_i32_0 = arith.constant 0 : i32
    return %arg0, %c0_i32 : i32, i32
  }
  func.func @transform_1(%arg0: i32, %arg1: i32) -> (i32, i32) {
    %c0_i32 = arith.constant 0 : i32
    %c0_i32_0 = arith.constant 0 : i32
    %c0_i32_1 = arith.constant 0 : i32
    return %c0_i32, %c0_i32_0 : i32, i32
  }
  func.func @transform_2(%arg0: i32, %arg1: i32) -> (i32, i32) {
    %c0_i32 = arith.constant 0 : i32
    %c0_i32_0 = arith.constant 0 : i32
    %c0_i32_1 = arith.constant 0 : i32
    return %c0_i32, %c0_i32_0 : i32, i32
  }
  func.func @transform_3(%arg0: i32, %arg1: i32) -> (i32, i32) {
    %c0_i32 = arith.constant 0 : i32
    %c0_i32_0 = arith.constant 0 : i32
    %c0_i32_1 = arith.constant 0 : i32
    return %c0_i32, %c0_i32_0 : i32, i32
  }
  func.func @transform_4(%arg0: i32, %arg1: i32) -> (i32, i32) {
    %c0_i32 = arith.constant 0 : i32
    %c0_i32_0 = arith.constant 0 : i32
    %c0_i32_1 = arith.constant 0 : i32
    return %c0_i32, %c0_i32_0 : i32, i32
  }
  func.func @transform_5(%arg0: i32, %arg1: i32) -> (i32, i32) {
    %c0_i32 = arith.constant 0 : i32
    %c0_i32_0 = arith.constant 0 : i32
    return %arg0, %c0_i32 : i32, i32
  }
}

</mosaic_0001>

<llo_original>
// kernel: feed_forward.1
$region0: #{feed_forward.1}
  #allocation0 [shape = 'u32[]', space=smem, size = 0x4, offset = 0x4, fixed_abs, tag = 'smem constant byte address 0x4 - core index']
  #allocation1 [shape = 'u32[72,128]{1,0:T(1,128)}', space=vmem, size = 0x9000, scoped, tag = 'internal scratch']
  #allocation2 [shape = 'f32[16,128]{1,0:T(8,128)}', space=vmem, size = 0x2000, scoped, tag = 'scratch operand']
  %s0 = inlined_call_operand.hbm [shape: bf16[16,128], index: 0, kind: input, shape index: {}]
  %s1 = inlined_call_operand.hbm [shape: bf16[128,2048], index: 1, kind: input, shape index: {}]
  %s2 = inlined_call_operand.hbm [shape: f32[1,2048], index: 2, kind: input, shape index: {}]
  %s3 = inlined_call_operand.hbm [shape: bf16[2048,128], index: 3, kind: input, shape index: {}]
  %s4 = inlined_call_operand.vmem [shape: f32[1,128], index: 4, kind: input, shape index: {}]
  %s5 = inlined_call_operand.hbm [shape: bf16[16,128], index: 5, kind: output, shape index: {}]
  %s6 = sld [smem:[#allocation0]]
  $region54: #{feed_forward.1} parent=0
    _
  %s8 = ssub.s32 1, %s6
  %s9 = scalar_select 0, %s8, %s6
  $region1: #{feed_forward.1} parent=0
    #allocation3 [shape = 'u8[4096]{0}', space=vmem, size = 0x1000, scoped, tag = 'input window, operand 0, single buffered']
    #allocation4 [shape = 's32[1]{0}', space=sflag, size = 0x4, scoped, tag = 'scoped memory for feed_forward.1']
    #allocation5 [shape = 's32[1]{0}', space=sflag, size = 0x4, scoped, tag = 'scoped memory for feed_forward.1']
    #allocation6 [shape = 'u8[524288]{0}', space=vmem, size = 0x80000, scoped, tag = 'input window, operand 1, single buffered']
    #allocation7 [shape = 's32[1]{0}', space=sflag, size = 0x4, scoped, tag = 'scoped memory for feed_forward.1']
    #allocation8 [shape = 'u8[8192]{0}', space=vmem, size = 0x2000, scoped, tag = 'input window, operand 2, single buffered']
    #allocation9 [shape = 'u8[524288]{0}', space=vmem, size = 0x80000, scoped, tag = 'input window, operand 3, single buffered']
    #allocation10 [shape = 's32[1]{0}', space=sflag, size = 0x4, scoped, tag = 'scoped memory for feed_forward.1']
    #allocation11 [shape = 'u8[4096]{0}', space=vmem, size = 0x1000, scoped, tag = 'output window, operand 0, single buffered']
    %10 = vsyncpa [#allocation4], 0
    %11 = vsyncpa [#allocation7], 0
    %12 = vsyncpa [#allocation10], 0
    %13 = vsyncpa [#allocation5], 0
    // Predicated region
    $region2: #{feed_forward.1} parent=1 // pred_check
      _
    $region3: #{feed_forward.1} parent=1 // pred_check_branch
      %15 = sbr.rel (0) target = $region5
    $region4: #{feed_forward.1} parent=1 // pred_region
      %17 = vsyncadd [#allocation4], 0
      %s18 = sshll.u32 %s0, 4
      %s19 = int_to_ptr.hbm [resolvable:$true] %s18
      %s20 = sshll.u32 [#allocation3], 4
      %s21 = int_to_ptr.vmem [resolvable:$true] %s20
      %26 = dma.hbm_to_vmem [thread:$0]  %s19, 128, %s21, [#allocation4], 64, 64, 4
    $region5: #{feed_forward.1} parent=1 // pred_fallthru
      _
    // Predicated region
    $region6: #{feed_forward.1} parent=1 // pred_check
      _
    $region7: #{feed_forward.1} parent=1 // pred_check_branch
      %28 = sbr.rel (0) target = $region9
    $region8: #{feed_forward.1} parent=1 // pred_region
      %30 = vsyncadd [#allocation7], 0
      %s31 = sshll.u32 %s1, 4
      %s32 = int_to_ptr.hbm [resolvable:$true] %s31
      %s33 = sshll.u32 [#allocation6], 4
      %s34 = int_to_ptr.vmem [resolvable:$true] %s33
      %39 = dma.hbm_to_vmem [thread:$0]  %s32, 16384, %s34, [#allocation7], 1024, 1024, 64
    $region9: #{feed_forward.1} parent=1 // pred_fallthru
      _
    // Predicated region
    $region10: #{feed_forward.1} parent=1 // pred_check
      _
    $region11: #{feed_forward.1} parent=1 // pred_check_branch
      %41 = sbr.rel (0) target = $region13
    $region12: #{feed_forward.1} parent=1 // pred_region
      %43 = vsyncadd [#allocation7], 0
      %s45 = sshll.u32 %s2, 4
      %s46 = int_to_ptr.hbm [resolvable:$true] %s45
      %s47 = sshll.u32 [#allocation8], 4
      %s48 = int_to_ptr.vmem [resolvable:$true] %s47
      %50 = dma.hbm_to_vmem [thread:$0]  %s46, 256, %s48, [#allocation7]
    $region13: #{feed_forward.1} parent=1 // pred_fallthru
      _
    // Predicated region
    $region14: #{feed_forward.1} parent=1 // pred_check
      _
    $region15: #{feed_forward.1} parent=1 // pred_check_branch
      %52 = sbr.rel (0) target = $region17
    $region16: #{feed_forward.1} parent=1 // pred_region
      %54 = vsyncadd [#allocation10], 0
      %s55 = sshll.u32 %s3, 4
      %s56 = int_to_ptr.hbm [resolvable:$true] %s55
      %s57 = sshll.u32 [#allocation9], 4
      %s58 = int_to_ptr.vmem [resolvable:$true] %s57
      %63 = dma.hbm_to_vmem [thread:$0]  %s56, 16384, %s58, [#allocation10], 64, 64, 4
    $region17: #{feed_forward.1} parent=1 // pred_fallthru
      _
    // Predicated region
    $region18: #{feed_forward.1} parent=1 // pred_check
      _
    $region19: #{feed_forward.1} parent=1 // pred_check_branch
      %65 = sbr.rel (0) target = $region21
    $region20: #{feed_forward.1} parent=1 // pred_region
      _
    $region21: #{feed_forward.1} parent=1 // pred_fallthru
      _
    // Predicated region
    $region22: #{feed_forward.1} parent=1 // pred_check
      _
    $region23: #{feed_forward.1} parent=1 // pred_check_branch
      %67 = sbr.rel (0) target = $region25
    $region24: #{feed_forward.1} parent=1 // pred_region
      %69 = dma.done [#allocation4], 128
    $region25: #{feed_forward.1} parent=1 // pred_fallthru
      _
    // Predicated region
    $region26: #{feed_forward.1} parent=1 // pred_check
      _
    $region27: #{feed_forward.1} parent=1 // pred_check_branch
      %71 = sbr.rel (0) target = $region29
    $region28: #{feed_forward.1} parent=1 // pred_region
      %73 = dma.done [#allocation7], 16384
    $region29: #{feed_forward.1} parent=1 // pred_fallthru
      _
    // Predicated region
    $region30: #{feed_forward.1} parent=1 // pred_check
      _
    $region31: #{feed_forward.1} parent=1 // pred_check_branch
      %75 = sbr.rel (0) target = $region33
    $region32: #{feed_forward.1} parent=1 // pred_region
      %77 = dma.done [#allocation7], 256
    $region33: #{feed_forward.1} parent=1 // pred_fallthru
      _
    // Predicated region
    $region34: #{feed_forward.1} parent=1 // pred_check
      _
    $region35: #{feed_forward.1} parent=1 // pred_check_branch
      %79 = sbr.rel (0) target = $region37
    $region36: #{feed_forward.1} parent=1 // pred_region
      %81 = dma.done [#allocation10], 16384
    $region37: #{feed_forward.1} parent=1 // pred_fallthru
      _
    %p82 = scmp.eq.s32.totalorder 0, 0
    // Predicated region
    $region38: #{feed_forward.1} parent=1 // pred_check
      %p83 = pneg %p82
    $region39: #{feed_forward.1} parent=1 // pred_check_branch
      %85 = sbr.rel (%p83) target = $region41
    $region40: #{feed_forward.1} parent=1 // pred_region
      %v86 = vld [vmem:[%s4] sm:$0x1]
      %v88 = vperm.slane %v86, 0
      %90 = vst [vmem:[#allocation2] sm:$0xff] %v88
      %91 = vst [vmem:[#allocation2 + $0x8] sm:$0xff] %v88
    $region41: #{feed_forward.1} parent=1 // pred_fallthru
      _
    %v92 = vld [vmem:[#allocation3] sm:$0xf]
    %v93 = vld [vmem:[#allocation3 + $0x4] sm:$0xf]
    %v94 = vld [vmem:[#allocation6] sm:$0xff]
    %v95 = vld [vmem:[#allocation6 + $0x8] sm:$0xff]
    %v96 = vld [vmem:[#allocation6 + $0x10] sm:$0xff]
    %v97 = vld [vmem:[#allocation6 + $0x18] sm:$0xff]
    %v98 = vld [vmem:[#allocation6 + $0x20] sm:$0xff]
    %v99 = vld [vmem:[#allocation6 + $0x28] sm:$0xff]
    %v100 = vld [vmem:[#allocation6 + $0x30] sm:$0xff]
    %v101 = vld [vmem:[#allocation6 + $0x38] sm:$0xff]
    %v102 = vld [vmem:[#allocation6 + $0x40] sm:$0xff]
    %v103 = vld [vmem:[#allocation6 + $0x48] sm:$0xff]
    %v104 = vld [vmem:[#allocation6 + $0x50] sm:$0xff]
    %v105 = vld [vmem:[#allocation6 + $0x58] sm:$0xff]
    %v106 = vld [vmem:[#allocation6 + $0x60] sm:$0xff]
    %v107 = vld [vmem:[#allocation6 + $0x68] sm:$0xff]
    %v108 = vld [vmem:[#allocation6 + $0x70] sm:$0xff]
    %v109 = vld [vmem:[#allocation6 + $0x78] sm:$0xff]
    %v110 = vld [vmem:[#allocation6 + $0x80] sm:$0xff]
    %v111 = vld [vmem:[#allocation6 + $0x88] sm:$0xff]
    %v112 = vld [vmem:[#allocation6 + $0x90] sm:$0xff]
    %v113 = vld [vmem:[#allocation6 + $0x98] sm:$0xff]
    %v114 = vld [vmem:[#allocation6 + $0xa0] sm:$0xff]
    %v115 = vld [vmem:[#allocation6 + $0xa8] sm:$0xff]
    %v116 = vld [vmem:[#allocation6 + $0xb0] sm:$0xff]
    %v117 = vld [vmem:[#allocation6 + $0xb8] sm:$0xff]
    %v118 = vld [vmem:[#allocation6 + $0xc0] sm:$0xff]
    %v119 = vld [vmem:[#allocation6 + $0xc8] sm:$0xff]
    %v120 = vld [vmem:[#allocation6 + $0xd0] sm:$0xff]
    %v121 = vld [vmem:[#allocation6 + $0xd8] sm:$0xff]
    %v122 = vld [vmem:[#allocation6 + $0xe0] sm:$0xff]
    %v123 = vld [vmem:[#allocation6 + $0xe8] sm:$0xff]
    %v124 = vld [vmem:[#allocation6 + $0xf0] sm:$0xff]
    %v125 = vld [vmem:[#allocation6 + $0xf8] sm:$0xff]
    %v126 = vld [vmem:[#allocation6 + $0x100] sm:$0xff]
    %v127 = vld [vmem:[#allocation6 + $0x108] sm:$0xff]
    %v128 = vld [vmem:[#allocation6 + $0x110] sm:$0xff]
    %v129 = vld [vmem:[#allocation6 + $0x118] sm:$0xff]
    %v130 = vld [vmem:[#allocation6 + $0x120] sm:$0xff]
    %v131 = vld [vmem:[#allocation6 + $0x128] sm:$0xff]
    %v132 = vld [vmem:[#allocation6 + $0x130] sm:$0xff]
    %v133 = vld [vmem:[#allocation6 + $0x138] sm:$0xff]
    %v134 = vld [vmem:[#allocation6 + $0x140] sm:$0xff]
    %v135 = vld [vmem:[#allocation6 + $0x148] sm:$0xff]
    %v136 = vld [vmem:[#allocation6 + $0x150] sm:$0xff]
    %v137 = vld [vmem:[#allocation6 + $0x158] sm:$0xff]
    %v138 = vld [vmem:[#allocation6 + $0x160] sm:$0xff]
    %v139 = vld [vmem:[#allocation6 + $0x168] sm:$0xff]
    %v140 = vld [vmem:[#allocation6 + $0x170] sm:$0xff]
    %v141 = vld [vmem:[#allocation6 + $0x178] sm:$0xff]
    %v142 = vld [vmem:[#allocation6 + $0x180] sm:$0xff]
    %v143 = vld [vmem:[#allocation6 + $0x188] sm:$0xff]
    %v144 = vld [vmem:[#allocation6 + $0x190] sm:$0xff]
    %v145 = vld [vmem:[#allocation6 + $0x198] sm:$0xff]
    %v146 = vld [vmem:[#allocation6 + $0x1a0] sm:$0xff]
    %v147 = vld [vmem:[#allocation6 + $0x1a8] sm:$0xff]
    %v148 = vld [vmem:[#allocation6 + $0x1b0] sm:$0xff]
    %v149 = vld [vmem:[#allocation6 + $0x1b8] sm:$0xff]
    %v150 = vld [vmem:[#allocation6 + $0x1c0] sm:$0xff]
    %v151 = vld [vmem:[#allocation6 + $0x1c8] sm:$0xff]
    %v152 = vld [vmem:[#allocation6 + $0x1d0] sm:$0xff]
    %v153 = vld [vmem:[#allocation6 + $0x1d8] sm:$0xff]
    %v154 = vld [vmem:[#allocation6 + $0x1e0] sm:$0xff]
    %v155 = vld [vmem:[#allocation6 + $0x1e8] sm:$0xff]
    %v156 = vld [vmem:[#allocation6 + $0x1f0] sm:$0xff]
    %v157 = vld [vmem:[#allocation6 + $0x1f8] sm:$0xff]
    %v158 = vld [vmem:[#allocation6 + $0x200] sm:$0xff]
    %v159 = vld [vmem:[#allocation6 + $0x208] sm:$0xff]
    %v160 = vld [vmem:[#allocation6 + $0x210] sm:$0xff]
    %v161 = vld [vmem:[#allocation6 + $0x218] sm:$0xff]
    %v162 = vld [vmem:[#allocation6 + $0x220] sm:$0xff]
    %v163 = vld [vmem:[#allocation6 + $0x228] sm:$0xff]
    %v164 = vld [vmem:[#allocation6 + $0x230] sm:$0xff]
    %v165 = vld [vmem:[#allocation6 + $0x238] sm:$0xff]
    %v166 = vld [vmem:[#allocation6 + $0x240] sm:$0xff]
    %v167 = vld [vmem:[#allocation6 + $0x248] sm:$0xff]
    %v168 = vld [vmem:[#allocation6 + $0x250] sm:$0xff]
    %v169 = vld [vmem:[#allocation6 + $0x258] sm:$0xff]
    %v170 = vld [vmem:[#allocation6 + $0x260] sm:$0xff]
    %v171 = vld [vmem:[#allocation6 + $0x268] sm:$0xff]
    %v172 = vld [vmem:[#allocation6 + $0x270] sm:$0xff]
    %v173 = vld [vmem:[#allocation6 + $0x278] sm:$0xff]
    %v174 = vld [vmem:[#allocation6 + $0x280] sm:$0xff]
    %v175 = vld [vmem:[#allocation6 + $0x288] sm:$0xff]
    %v176 = vld [vmem:[#allocation6 + $0x290] sm:$0xff]
    %v177 = vld [vmem:[#allocation6 + $0x298] sm:$0xff]
    %v178 = vld [vmem:[#allocation6 + $0x2a0] sm:$0xff]
    %v179 = vld [vmem:[#allocation6 + $0x2a8] sm:$0xff]
    %v180 = vld [vmem:[#allocation6 + $0x2b0] sm:$0xff]
    %v181 = vld [vmem:[#allocation6 + $0x2b8] sm:$0xff]
    %v182 = vld [vmem:[#allocation6 + $0x2c0] sm:$0xff]
    %v183 = vld [vmem:[#allocation6 + $0x2c8] sm:$0xff]
    %v184 = vld [vmem:[#allocation6 + $0x2d0] sm:$0xff]
    %v185 = vld [vmem:[#allocation6 + $0x2d8] sm:$0xff]
    %v186 = vld [vmem:[#allocation6 + $0x2e0] sm:$0xff]
    %v187 = vld [vmem:[#allocation6 + $0x2e8] sm:$0xff]
    %v188 = vld [vmem:[#allocation6 + $0x2f0] sm:$0xff]
    %v189 = vld [vmem:[#allocation6 + $0x2f8] sm:$0xff]
    %v190 = vld [vmem:[#allocation6 + $0x300] sm:$0xff]
    %v191 = vld [vmem:[#allocation6 + $0x308] sm:$0xff]
    %v192 = vld [vmem:[#allocation6 + $0x310] sm:$0xff]
    %v193 = vld [vmem:[#allocation6 + $0x318] sm:$0xff]
    %v194 = vld [vmem:[#allocation6 + $0x320] sm:$0xff]
    %v195 = vld [vmem:[#allocation6 + $0x328] sm:$0xff]
    %v196 = vld [vmem:[#allocation6 + $0x330] sm:$0xff]
    %v197 = vld [vmem:[#allocation6 + $0x338] sm:$0xff]
    %v198 = vld [vmem:[#allocation6 + $0x340] sm:$0xff]
    %v199 = vld [vmem:[#allocation6 + $0x348] sm:$0xff]
    %v200 = vld [vmem:[#allocation6 + $0x350] sm:$0xff]
    %v201 = vld [vmem:[#allocation6 + $0x358] sm:$0xff]
    %v202 = vld [vmem:[#allocation6 + $0x360] sm:$0xff]
    %v203 = vld [vmem:[#allocation6 + $0x368] sm:$0xff]
    %v204 = vld [vmem:[#allocation6 + $0x370] sm:$0xff]
    %v205 = vld [vmem:[#allocation6 + $0x378] sm:$0xff]
    %v206 = vld [vmem:[#allocation6 + $0x380] sm:$0xff]
    %v207 = vld [vmem:[#allocation6 + $0x388] sm:$0xff]
    %v208 = vld [vmem:[#allocation6 + $0x390] sm:$0xff]
    %v209 = vld [vmem:[#allocation6 + $0x398] sm:$0xff]
    %v210 = vld [vmem:[#allocation6 + $0x3a0] sm:$0xff]
    %v211 = vld [vmem:[#allocation6 + $0x3a8] sm:$0xff]
    %v212 = vld [vmem:[#allocation6 + $0x3b0] sm:$0xff]
    %v213 = vld [vmem:[#allocation6 + $0x3b8] sm:$0xff]
    %v214 = vld [vmem:[#allocation6 + $0x3c0] sm:$0xff]
    %v215 = vld [vmem:[#allocation6 + $0x3c8] sm:$0xff]
    %v216 = vld [vmem:[#allocation6 + $0x3d0] sm:$0xff]
    %v217 = vld [vmem:[#allocation6 + $0x3d8] sm:$0xff]
    %v218 = vld [vmem:[#allocation6 + $0x3e0] sm:$0xff]
    %v219 = vld [vmem:[#allocation6 + $0x3e8] sm:$0xff]
    %v220 = vld [vmem:[#allocation6 + $0x3f0] sm:$0xff]
    %v221 = vld [vmem:[#allocation6 + $0x3f8] sm:$0xff]
    %s222 = smul.u32 0, 16
    %s223 = scalar_lea.vmem [#allocation8], %s222
    %v224 = vld [vmem:[%s223] sm:$0xff]
    %v225 = vld [vmem:[%s223 + $0x8] sm:$0xff]
    %v228 = vperm.slane %v224, 0
    %v229 = vperm.slane %v224, 1
    %v230 = vperm.slane %v224, 2
    %v231 = vperm.slane %v224, 3
    %v232 = vperm.slane %v224, 4
    %v233 = vperm.slane %v224, 5
    %v234 = vperm.slane %v224, 6
    %v235 = vperm.slane %v224, 7
    %v236 = vperm.slane %v225, 0
    %v237 = vperm.slane %v225, 1
    %v238 = vperm.slane %v225, 2
    %v239 = vperm.slane %v225, 3
    %v240 = vperm.slane %v225, 4
    %v241 = vperm.slane %v225, 5
    %v242 = vperm.slane %v225, 6
    %v243 = vperm.slane %v225, 7
    %v262 = vunpack.c.l.b16 %v92
    %v263 = vunpack.c.l.b16 %v93
    %v264 = vpack.c.b16 %v263, %v262
    %v394 = vunpack.c.l.b16 %v94
    %v395 = vunpack.c.h.b16 %v94
    %v396 = vunpack.c.l.b16 %v95
    %v397 = vunpack.c.h.b16 %v95
    %v398 = vunpack.c.l.b16 %v96
    %v399 = vunpack.c.h.b16 %v96
    %v400 = vunpack.c.l.b16 %v97
    %v401 = vunpack.c.h.b16 %v97
    %v402 = vunpack.c.l.b16 %v98
    %v403 = vunpack.c.h.b16 %v98
    %v404 = vunpack.c.l.b16 %v99
    %v405 = vunpack.c.h.b16 %v99
    %v406 = vunpack.c.l.b16 %v100
    %v407 = vunpack.c.h.b16 %v100
    %v408 = vunpack.c.l.b16 %v101
    %v409 = vunpack.c.h.b16 %v101
    %v410 = vunpack.c.l.b16 %v102
    %v411 = vunpack.c.h.b16 %v102
    %v412 = vunpack.c.l.b16 %v103
    %v413 = vunpack.c.h.b16 %v103
    %v414 = vunpack.c.l.b16 %v104
    %v415 = vunpack.c.h.b16 %v104
    %v416 = vunpack.c.l.b16 %v105
    %v417 = vunpack.c.h.b16 %v105
    %v418 = vunpack.c.l.b16 %v106
    %v419 = vunpack.c.h.b16 %v106
    %v420 = vunpack.c.l.b16 %v107
    %v421 = vunpack.c.h.b16 %v107
    %v422 = vunpack.c.l.b16 %v108
    %v423 = vunpack.c.h.b16 %v108
    %v424 = vunpack.c.l.b16 %v109
    %v425 = vunpack.c.h.b16 %v109
    %v426 = vunpack.c.l.b16 %v110
    %v427 = vunpack.c.h.b16 %v110
    %v428 = vunpack.c.l.b16 %v111
    %v429 = vunpack.c.h.b16 %v111
    %v430 = vunpack.c.l.b16 %v112
    %v431 = vunpack.c.h.b16 %v112
    %v432 = vunpack.c.l.b16 %v113
    %v433 = vunpack.c.h.b16 %v113
    %v434 = vunpack.c.l.b16 %v114
    %v435 = vunpack.c.h.b16 %v114
    %v436 = vunpack.c.l.b16 %v115
    %v437 = vunpack.c.h.b16 %v115
    %v438 = vunpack.c.l.b16 %v116
    %v439 = vunpack.c.h.b16 %v116
    %v440 = vunpack.c.l.b16 %v117
    %v441 = vunpack.c.h.b16 %v117
    %v442 = vunpack.c.l.b16 %v118
    %v443 = vunpack.c.h.b16 %v118
    %v444 = vunpack.c.l.b16 %v119
    %v445 = vunpack.c.h.b16 %v119
    %v446 = vunpack.c.l.b16 %v120
    %v447 = vunpack.c.h.b16 %v120
    %v448 = vunpack.c.l.b16 %v121
    %v449 = vunpack.c.h.b16 %v121
    %v450 = vunpack.c.l.b16 %v122
    %v451 = vunpack.c.h.b16 %v122
    %v452 = vunpack.c.l.b16 %v123
    %v453 = vunpack.c.h.b16 %v123
    %v454 = vunpack.c.l.b16 %v124
    %v455 = vunpack.c.h.b16 %v124
    %v456 = vunpack.c.l.b16 %v125
    %v457 = vunpack.c.h.b16 %v125
    %v458 = vunpack.c.l.b16 %v126
    %v459 = vunpack.c.h.b16 %v126
    %v460 = vunpack.c.l.b16 %v127
    %v461 = vunpack.c.h.b16 %v127
    %v462 = vunpack.c.l.b16 %v128
    %v463 = vunpack.c.h.b16 %v128
    %v464 = vunpack.c.l.b16 %v129
    %v465 = vunpack.c.h.b16 %v129
    %v466 = vunpack.c.l.b16 %v130
    %v467 = vunpack.c.h.b16 %v130
    %v468 = vunpack.c.l.b16 %v131
    %v469 = vunpack.c.h.b16 %v131
    %v470 = vunpack.c.l.b16 %v132
    %v471 = vunpack.c.h.b16 %v132
    %v472 = vunpack.c.l.b16 %v133
    %v473 = vunpack.c.h.b16 %v133
    %v474 = vunpack.c.l.b16 %v134
    %v475 = vunpack.c.h.b16 %v134
    %v476 = vunpack.c.l.b16 %v135
    %v477 = vunpack.c.h.b16 %v135
    %v478 = vunpack.c.l.b16 %v136
    %v479 = vunpack.c.h.b16 %v136
    %v480 = vunpack.c.l.b16 %v137
    %v481 = vunpack.c.h.b16 %v137
    %v482 = vunpack.c.l.b16 %v138
    %v483 = vunpack.c.h.b16 %v138
    %v484 = vunpack.c.l.b16 %v139
    %v485 = vunpack.c.h.b16 %v139
    %v486 = vunpack.c.l.b16 %v140
    %v487 = vunpack.c.h.b16 %v140
    %v488 = vunpack.c.l.b16 %v141
    %v489 = vunpack.c.h.b16 %v141
    %v490 = vunpack.c.l.b16 %v142
    %v491 = vunpack.c.h.b16 %v142
    %v492 = vunpack.c.l.b16 %v143
    %v493 = vunpack.c.h.b16 %v143
    %v494 = vunpack.c.l.b16 %v144
    %v495 = vunpack.c.h.b16 %v144
    %v496 = vunpack.c.l.b16 %v145
    %v497 = vunpack.c.h.b16 %v145
    %v498 = vunpack.c.l.b16 %v146
    %v499 = vunpack.c.h.b16 %v146
    %v500 = vunpack.c.l.b16 %v147
    %v501 = vunpack.c.h.b16 %v147
    %v502 = vunpack.c.l.b16 %v148
    %v503 = vunpack.c.h.b16 %v148
    %v504 = vunpack.c.l.b16 %v149
    %v505 = vunpack.c.h.b16 %v149
    %v506 = vunpack.c.l.b16 %v150
    %v507 = vunpack.c.h.b16 %v150
    %v508 = vunpack.c.l.b16 %v151
    %v509 = vunpack.c.h.b16 %v151
    %v510 = vunpack.c.l.b16 %v152
    %v511 = vunpack.c.h.b16 %v152
    %v512 = vunpack.c.l.b16 %v153
    %v513 = vunpack.c.h.b16 %v153
    %v514 = vunpack.c.l.b16 %v154
    %v515 = vunpack.c.h.b16 %v154
    %v516 = vunpack.c.l.b16 %v155
    %v517 = vunpack.c.h.b16 %v155
    %v518 = vunpack.c.l.b16 %v156
    %v519 = vunpack.c.h.b16 %v156
    %v520 = vunpack.c.l.b16 %v157
    %v521 = vunpack.c.h.b16 %v157
    %v522 = vunpack.c.l.b16 %v158
    %v523 = vunpack.c.h.b16 %v158
    %v524 = vunpack.c.l.b16 %v159
    %v525 = vunpack.c.h.b16 %v159
    %v526 = vunpack.c.l.b16 %v160
    %v527 = vunpack.c.h.b16 %v160
    %v528 = vunpack.c.l.b16 %v161
    %v529 = vunpack.c.h.b16 %v161
    %v530 = vunpack.c.l.b16 %v162
    %v531 = vunpack.c.h.b16 %v162
    %v532 = vunpack.c.l.b16 %v163
    %v533 = vunpack.c.h.b16 %v163
    %v534 = vunpack.c.l.b16 %v164
    %v535 = vunpack.c.h.b16 %v164
    %v536 = vunpack.c.l.b16 %v165
    %v537 = vunpack.c.h.b16 %v165
    %v538 = vunpack.c.l.b16 %v166
    %v539 = vunpack.c.h.b16 %v166
    %v540 = vunpack.c.l.b16 %v167
    %v541 = vunpack.c.h.b16 %v167
    %v542 = vunpack.c.l.b16 %v168
    %v543 = vunpack.c.h.b16 %v168
    %v544 = vunpack.c.l.b16 %v169
    %v545 = vunpack.c.h.b16 %v169
    %v546 = vunpack.c.l.b16 %v170
    %v547 = vunpack.c.h.b16 %v170
    %v548 = vunpack.c.l.b16 %v171
    %v549 = vunpack.c.h.b16 %v171
    %v550 = vunpack.c.l.b16 %v172
    %v551 = vunpack.c.h.b16 %v172
    %v552 = vunpack.c.l.b16 %v173
    %v553 = vunpack.c.h.b16 %v173
    %v554 = vunpack.c.l.b16 %v174
    %v555 = vunpack.c.h.b16 %v174
    %v556 = vunpack.c.l.b16 %v175
    %v557 = vunpack.c.h.b16 %v175
    %v558 = vunpack.c.l.b16 %v176
    %v559 = vunpack.c.h.b16 %v176
    %v560 = vunpack.c.l.b16 %v177
    %v561 = vunpack.c.h.b16 %v177
    %v562 = vunpack.c.l.b16 %v178
    %v563 = vunpack.c.h.b16 %v178
    %v564 = vunpack.c.l.b16 %v179
    %v565 = vunpack.c.h.b16 %v179
    %v566 = vunpack.c.l.b16 %v180
    %v567 = vunpack.c.h.b16 %v180
    %v568 = vunpack.c.l.b16 %v181
    %v569 = vunpack.c.h.b16 %v181
    %v570 = vunpack.c.l.b16 %v182
    %v571 = vunpack.c.h.b16 %v182
    %v572 = vunpack.c.l.b16 %v183
    %v573 = vunpack.c.h.b16 %v183
    %v574 = vunpack.c.l.b16 %v184
    %v575 = vunpack.c.h.b16 %v184
    %v576 = vunpack.c.l.b16 %v185
    %v577 = vunpack.c.h.b16 %v185
    %v578 = vunpack.c.l.b16 %v186
    %v579 = vunpack.c.h.b16 %v186
    %v580 = vunpack.c.l.b16 %v187
    %v581 = vunpack.c.h.b16 %v187
    %v582 = vunpack.c.l.b16 %v188
    %v583 = vunpack.c.h.b16 %v188
    %v584 = vunpack.c.l.b16 %v189
    %v585 = vunpack.c.h.b16 %v189
    %v586 = vunpack.c.l.b16 %v190
    %v587 = vunpack.c.h.b16 %v190
    %v588 = vunpack.c.l.b16 %v191
    %v589 = vunpack.c.h.b16 %v191
    %v590 = vunpack.c.l.b16 %v192
    %v591 = vunpack.c.h.b16 %v192
    %v592 = vunpack.c.l.b16 %v193
    %v593 = vunpack.c.h.b16 %v193
    %v594 = vunpack.c.l.b16 %v194
    %v595 = vunpack.c.h.b16 %v194
    %v596 = vunpack.c.l.b16 %v195
    %v597 = vunpack.c.h.b16 %v195
    %v598 = vunpack.c.l.b16 %v196
    %v599 = vunpack.c.h.b16 %v196
    %v600 = vunpack.c.l.b16 %v197
    %v601 = vunpack.c.h.b16 %v197
    %v602 = vunpack.c.l.b16 %v198
    %v603 = vunpack.c.h.b16 %v198
    %v604 = vunpack.c.l.b16 %v199
    %v605 = vunpack.c.h.b16 %v199
    %v606 = vunpack.c.l.b16 %v200
    %v607 = vunpack.c.h.b16 %v200
    %v608 = vunpack.c.l.b16 %v201
    %v609 = vunpack.c.h.b16 %v201
    %v610 = vunpack.c.l.b16 %v202
    %v611 = vunpack.c.h.b16 %v202
    %v612 = vunpack.c.l.b16 %v203
    %v613 = vunpack.c.h.b16 %v203
    %v614 = vunpack.c.l.b16 %v204
    %v615 = vunpack.c.h.b16 %v204
    %v616 = vunpack.c.l.b16 %v205
    %v617 = vunpack.c.h.b16 %v205
    %v618 = vunpack.c.l.b16 %v206
    %v619 = vunpack.c.h.b16 %v206
    %v620 = vunpack.c.l.b16 %v207
    %v621 = vunpack.c.h.b16 %v207
    %v622 = vunpack.c.l.b16 %v208
    %v623 = vunpack.c.h.b16 %v208
    %v624 = vunpack.c.l.b16 %v209
    %v625 = vunpack.c.h.b16 %v209
    %v626 = vunpack.c.l.b16 %v210
    %v627 = vunpack.c.h.b16 %v210
    %v628 = vunpack.c.l.b16 %v211
    %v629 = vunpack.c.h.b16 %v211
    %v630 = vunpack.c.l.b16 %v212
    %v631 = vunpack.c.h.b16 %v212
    %v632 = vunpack.c.l.b16 %v213
    %v633 = vunpack.c.h.b16 %v213
    %v634 = vunpack.c.l.b16 %v214
    %v635 = vunpack.c.h.b16 %v214
    %v636 = vunpack.c.l.b16 %v215
    %v637 = vunpack.c.h.b16 %v215
    %v638 = vunpack.c.l.b16 %v216
    %v639 = vunpack.c.h.b16 %v216
    %v640 = vunpack.c.l.b16 %v217
    %v641 = vunpack.c.h.b16 %v217
    %v642 = vunpack.c.l.b16 %v218
    %v643 = vunpack.c.h.b16 %v218
    %v644 = vunpack.c.l.b16 %v219
    %v645 = vunpack.c.h.b16 %v219
    %v646 = vunpack.c.l.b16 %v220
    %v647 = vunpack.c.h.b16 %v220
    %v648 = vunpack.c.l.b16 %v221
    %v649 = vunpack.c.h.b16 %v221
    %v650 = vpack.c.b16 %v410, %v394
    %v651 = vpack.c.b16 %v411, %v395
    %v652 = vpack.c.b16 %v412, %v396
    %v653 = vpack.c.b16 %v413, %v397
    %v654 = vpack.c.b16 %v414, %v398
    %v655 = vpack.c.b16 %v415, %v399
    %v656 = vpack.c.b16 %v416, %v400
    %v657 = vpack.c.b16 %v417, %v401
    %v658 = vpack.c.b16 %v418, %v402
    %v659 = vpack.c.b16 %v419, %v403
    %v660 = vpack.c.b16 %v420, %v404
    %v661 = vpack.c.b16 %v421, %v405
    %v662 = vpack.c.b16 %v422, %v406
    %v663 = vpack.c.b16 %v423, %v407
    %v664 = vpack.c.b16 %v424, %v408
    %v665 = vpack.c.b16 %v425, %v409
    %v666 = vpack.c.b16 %v442, %v426
    %v667 = vpack.c.b16 %v443, %v427
    %v668 = vpack.c.b16 %v444, %v428
    %v669 = vpack.c.b16 %v445, %v429
    %v670 = vpack.c.b16 %v446, %v430
    %v671 = vpack.c.b16 %v447, %v431
    %v672 = vpack.c.b16 %v448, %v432
    %v673 = vpack.c.b16 %v449, %v433
    %v674 = vpack.c.b16 %v450, %v434
    %v675 = vpack.c.b16 %v451, %v435
    %v676 = vpack.c.b16 %v452, %v436
    %v677 = vpack.c.b16 %v453, %v437
    %v678 = vpack.c.b16 %v454, %v438
    %v679 = vpack.c.b16 %v455, %v439
    %v680 = vpack.c.b16 %v456, %v440
    %v681 = vpack.c.b16 %v457, %v441
    %v682 = vpack.c.b16 %v474, %v458
    %v683 = vpack.c.b16 %v475, %v459
    %v684 = vpack.c.b16 %v476, %v460
    %v685 = vpack.c.b16 %v477, %v461
    %v686 = vpack.c.b16 %v478, %v462
    %v687 = vpack.c.b16 %v479, %v463
    %v688 = vpack.c.b16 %v480, %v464
    %v689 = vpack.c.b16 %v481, %v465
    %v690 = vpack.c.b16 %v482, %v466
    %v691 = vpack.c.b16 %v483, %v467
    %v692 = vpack.c.b16 %v484, %v468
    %v693 = vpack.c.b16 %v485, %v469
    %v694 = vpack.c.b16 %v486, %v470
    %v695 = vpack.c.b16 %v487, %v471
    %v696 = vpack.c.b16 %v488, %v472
    %v697 = vpack.c.b16 %v489, %v473
    %v698 = vpack.c.b16 %v506, %v490
    %v699 = vpack.c.b16 %v507, %v491
    %v700 = vpack.c.b16 %v508, %v492
    %v701 = vpack.c.b16 %v509, %v493
    %v702 = vpack.c.b16 %v510, %v494
    %v703 = vpack.c.b16 %v511, %v495
    %v704 = vpack.c.b16 %v512, %v496
    %v705 = vpack.c.b16 %v513, %v497
    %v706 = vpack.c.b16 %v514, %v498
    %v707 = vpack.c.b16 %v515, %v499
    %v708 = vpack.c.b16 %v516, %v500
    %v709 = vpack.c.b16 %v517, %v501
    %v710 = vpack.c.b16 %v518, %v502
    %v711 = vpack.c.b16 %v519, %v503
    %v712 = vpack.c.b16 %v520, %v504
    %v713 = vpack.c.b16 %v521, %v505
    %v714 = vpack.c.b16 %v538, %v522
    %v715 = vpack.c.b16 %v539, %v523
    %v716 = vpack.c.b16 %v540, %v524
    %v717 = vpack.c.b16 %v541, %v525
    %v718 = vpack.c.b16 %v542, %v526
    %v719 = vpack.c.b16 %v543, %v527
    %v720 = vpack.c.b16 %v544, %v528
    %v721 = vpack.c.b16 %v545, %v529
    %v722 = vpack.c.b16 %v546, %v530
    %v723 = vpack.c.b16 %v547, %v531
    %v724 = vpack.c.b16 %v548, %v532
    %v725 = vpack.c.b16 %v549, %v533
    %v726 = vpack.c.b16 %v550, %v534
    %v727 = vpack.c.b16 %v551, %v535
    %v728 = vpack.c.b16 %v552, %v536
    %v729 = vpack.c.b16 %v553, %v537
    %v730 = vpack.c.b16 %v570, %v554
    %v731 = vpack.c.b16 %v571, %v555
    %v732 = vpack.c.b16 %v572, %v556
    %v733 = vpack.c.b16 %v573, %v557
    %v734 = vpack.c.b16 %v574, %v558
    %v735 = vpack.c.b16 %v575, %v559
    %v736 = vpack.c.b16 %v576, %v560
    %v737 = vpack.c.b16 %v577, %v561
    %v738 = vpack.c.b16 %v578, %v562
    %v739 = vpack.c.b16 %v579, %v563
    %v740 = vpack.c.b16 %v580, %v564
    %v741 = vpack.c.b16 %v581, %v565
    %v742 = vpack.c.b16 %v582, %v566
    %v743 = vpack.c.b16 %v583, %v567
    %v744 = vpack.c.b16 %v584, %v568
    %v745 = vpack.c.b16 %v585, %v569
    %v746 = vpack.c.b16 %v602, %v586
    %v747 = vpack.c.b16 %v603, %v587
    %v748 = vpack.c.b16 %v604, %v588
    %v749 = vpack.c.b16 %v605, %v589
    %v750 = vpack.c.b16 %v606, %v590
    %v751 = vpack.c.b16 %v607, %v591
    %v752 = vpack.c.b16 %v608, %v592
    %v753 = vpack.c.b16 %v609, %v593
    %v754 = vpack.c.b16 %v610, %v594
    %v755 = vpack.c.b16 %v611, %v595
    %v756 = vpack.c.b16 %v612, %v596
    %v757 = vpack.c.b16 %v613, %v597
    %v758 = vpack.c.b16 %v614, %v598
    %v759 = vpack.c.b16 %v615, %v599
    %v760 = vpack.c.b16 %v616, %v600
    %v761 = vpack.c.b16 %v617, %v601
    %v762 = vpack.c.b16 %v634, %v618
    %v763 = vpack.c.b16 %v635, %v619
    %v764 = vpack.c.b16 %v636, %v620
    %v765 = vpack.c.b16 %v637, %v621
    %v766 = vpack.c.b16 %v638, %v622
    %v767 = vpack.c.b16 %v639, %v623
    %v768 = vpack.c.b16 %v640, %v624
    %v769 = vpack.c.b16 %v641, %v625
    %v770 = vpack.c.b16 %v642, %v626
    %v771 = vpack.c.b16 %v643, %v627
    %v772 = vpack.c.b16 %v644, %v628
    %v773 = vpack.c.b16 %v645, %v629
    %v774 = vpack.c.b16 %v646, %v630
    %v775 = vpack.c.b16 %v647, %v631
    %v776 = vpack.c.b16 %v648, %v632
    %v777 = vpack.c.b16 %v649, %v633
    %906 = vmatpush.bf16.msra.mxu0 %v762
    %907 = vmatpush.bf16.msra.mxu0 %v746
    %908 = vmatpush.bf16.msra.mxu0 %v730
    %909 = vmatpush.bf16.msra.mxu0 %v714
    %910 = vmatpush.bf16.msra.mxu0 %v698
    %911 = vmatpush.bf16.msra.mxu0 %v682
    %912 = vmatpush.bf16.msra.mxu0 %v666
    %913 = vmatpush.bf16.msra.mxu0 %v650
    %914 = vmatmul.bf16.gmra.mxu0 %v264
    %v915 = vpop.f32.mrf.mxu0
    %v916 = vadd.f32 %v228, %v915
    %v917 = vpop.f32.mrf.mxu0
    %v918 = vadd.f32 %v228, %v917
    %919 = vdwg.mxu0
    %920 = vmatpush.bf16.msra.mxu0 %v763
    %921 = vmatpush.bf16.msra.mxu0 %v747
    %922 = vmatpush.bf16.msra.mxu0 %v731
    %923 = vmatpush.bf16.msra.mxu0 %v715
    %924 = vmatpush.bf16.msra.mxu0 %v699
    %925 = vmatpush.bf16.msra.mxu0 %v683
    %926 = vmatpush.bf16.msra.mxu0 %v667
    %927 = vmatpush.bf16.msra.mxu0 %v651
    %928 = vmatmul.bf16.gmra.mxu0 %v264
    %v929 = vpop.f32.mrf.mxu0
    %v930 = vadd.f32 %v229, %v929
    %v931 = vpop.f32.mrf.mxu0
    %v932 = vadd.f32 %v229, %v931
    %933 = vdwg.mxu0
    %934 = vmatpush.bf16.msra.mxu0 %v764
    %935 = vmatpush.bf16.msra.mxu0 %v748
    %936 = vmatpush.bf16.msra.mxu0 %v732
    %937 = vmatpush.bf16.msra.mxu0 %v716
    %938 = vmatpush.bf16.msra.mxu0 %v700
    %939 = vmatpush.bf16.msra.mxu0 %v684
    %940 = vmatpush.bf16.msra.mxu0 %v668
    %941 = vmatpush.bf16.msra.mxu0 %v652
    %942 = vmatmul.bf16.gmra.mxu0 %v264
    %v943 = vpop.f32.mrf.mxu0
    %v944 = vadd.f32 %v230, %v943
    %v945 = vpop.f32.mrf.mxu0
    %v946 = vadd.f32 %v230, %v945
    %947 = vdwg.mxu0
    %948 = vmatpush.bf16.msra.mxu0 %v765
    %949 = vmatpush.bf16.msra.mxu0 %v749
    %950 = vmatpush.bf16.msra.mxu0 %v733
    %951 = vmatpush.bf16.msra.mxu0 %v717
    %952 = vmatpush.bf16.msra.mxu0 %v701
    %953 = vmatpush.bf16.msra.mxu0 %v685
    %954 = vmatpush.bf16.msra.mxu0 %v669
    %955 = vmatpush.bf16.msra.mxu0 %v653
    %956 = vmatmul.bf16.gmra.mxu0 %v264
    %v957 = vpop.f32.mrf.mxu0
    %v958 = vadd.f32 %v231, %v957
    %v959 = vpop.f32.mrf.mxu0
    %v960 = vadd.f32 %v231, %v959
    %961 = vdwg.mxu0
    %962 = vmatpush.bf16.msra.mxu0 %v766
    %963 = vmatpush.bf16.msra.mxu0 %v750
    %964 = vmatpush.bf16.msra.mxu0 %v734
    %965 = vmatpush.bf16.msra.mxu0 %v718
    %966 = vmatpush.bf16.msra.mxu0 %v702
    %967 = vmatpush.bf16.msra.mxu0 %v686
    %968 = vmatpush.bf16.msra.mxu0 %v670
    %969 = vmatpush.bf16.msra.mxu0 %v654
    %970 = vmatmul.bf16.gmra.mxu0 %v264
    %v971 = vpop.f32.mrf.mxu0
    %v972 = vadd.f32 %v232, %v971
    %v973 = vpop.f32.mrf.mxu0
    %v974 = vadd.f32 %v232, %v973
    %975 = vdwg.mxu0
    %976 = vmatpush.bf16.msra.mxu0 %v767
    %977 = vmatpush.bf16.msra.mxu0 %v751
    %978 = vmatpush.bf16.msra.mxu0 %v735
    %979 = vmatpush.bf16.msra.mxu0 %v719
    %980 = vmatpush.bf16.msra.mxu0 %v703
    %981 = vmatpush.bf16.msra.mxu0 %v687
    %982 = vmatpush.bf16.msra.mxu0 %v671
    %983 = vmatpush.bf16.msra.mxu0 %v655
    %984 = vmatmul.bf16.gmra.mxu0 %v264
    %v985 = vpop.f32.mrf.mxu0
    %v986 = vadd.f32 %v233, %v985
    %v987 = vpop.f32.mrf.mxu0
    %v988 = vadd.f32 %v233, %v987
    %989 = vdwg.mxu0
    %990 = vmatpush.bf16.msra.mxu0 %v768
    %991 = vmatpush.bf16.msra.mxu0 %v752
    %992 = vmatpush.bf16.msra.mxu0 %v736
    %993 = vmatpush.bf16.msra.mxu0 %v720
    %994 = vmatpush.bf16.msra.mxu0 %v704
    %995 = vmatpush.bf16.msra.mxu0 %v688
    %996 = vmatpush.bf16.msra.mxu0 %v672
    %997 = vmatpush.bf16.msra.mxu0 %v656
    %998 = vmatmul.bf16.gmra.mxu0 %v264
    %v999 = vpop.f32.mrf.mxu0
    %v1000 = vadd.f32 %v234, %v999
    %v1001 = vpop.f32.mrf.mxu0
    %v1002 = vadd.f32 %v234, %v1001
    %1003 = vdwg.mxu0
    %1004 = vmatpush.bf16.msra.mxu0 %v769
    %1005 = vmatpush.bf16.msra.mxu0 %v753
    %1006 = vmatpush.bf16.msra.mxu0 %v737
    %1007 = vmatpush.bf16.msra.mxu0 %v721
    %1008 = vmatpush.bf16.msra.mxu0 %v705
    %1009 = vmatpush.bf16.msra.mxu0 %v689
    %1010 = vmatpush.bf16.msra.mxu0 %v673
    %1011 = vmatpush.bf16.msra.mxu0 %v657
    %1012 = vmatmul.bf16.gmra.mxu0 %v264
    %v1013 = vpop.f32.mrf.mxu0
    %v1014 = vadd.f32 %v235, %v1013
    %v1015 = vpop.f32.mrf.mxu0
    %v1016 = vadd.f32 %v235, %v1015
    %1017 = vdwg.mxu0
    %1018 = vmatpush.bf16.msra.mxu0 %v770
    %1019 = vmatpush.bf16.msra.mxu0 %v754
    %1020 = vmatpush.bf16.msra.mxu0 %v738
    %1021 = vmatpush.bf16.msra.mxu0 %v722
    %1022 = vmatpush.bf16.msra.mxu0 %v706
    %1023 = vmatpush.bf16.msra.mxu0 %v690
    %1024 = vmatpush.bf16.msra.mxu0 %v674
    %1025 = vmatpush.bf16.msra.mxu0 %v658
    %1026 = vmatmul.bf16.gmra.mxu0 %v264
    %v1027 = vpop.f32.mrf.mxu0
    %v1028 = vadd.f32 %v236, %v1027
    %v1029 = vpop.f32.mrf.mxu0
    %v1030 = vadd.f32 %v236, %v1029
    %1031 = vdwg.mxu0
    %1032 = vmatpush.bf16.msra.mxu0 %v771
    %1033 = vmatpush.bf16.msra.mxu0 %v755
    %1034 = vmatpush.bf16.msra.mxu0 %v739
    %1035 = vmatpush.bf16.msra.mxu0 %v723
    %1036 = vmatpush.bf16.msra.mxu0 %v707
    %1037 = vmatpush.bf16.msra.mxu0 %v691
    %1038 = vmatpush.bf16.msra.mxu0 %v675
    %1039 = vmatpush.bf16.msra.mxu0 %v659
    %1040 = vmatmul.bf16.gmra.mxu0 %v264
    %v1041 = vpop.f32.mrf.mxu0
    %v1042 = vadd.f32 %v237, %v1041
    %v1043 = vpop.f32.mrf.mxu0
    %v1044 = vadd.f32 %v237, %v1043
    %1045 = vdwg.mxu0
    %1046 = vmatpush.bf16.msra.mxu0 %v772
    %1047 = vmatpush.bf16.msra.mxu0 %v756
    %1048 = vmatpush.bf16.msra.mxu0 %v740
    %1049 = vmatpush.bf16.msra.mxu0 %v724
    %1050 = vmatpush.bf16.msra.mxu0 %v708
    %1051 = vmatpush.bf16.msra.mxu0 %v692
    %1052 = vmatpush.bf16.msra.mxu0 %v676
    %1053 = vmatpush.bf16.msra.mxu0 %v660
    %1054 = vmatmul.bf16.gmra.mxu0 %v264
    %v1055 = vpop.f32.mrf.mxu0
    %v1056 = vadd.f32 %v238, %v1055
    %v1057 = vpop.f32.mrf.mxu0
    %v1058 = vadd.f32 %v238, %v1057
    %1059 = vdwg.mxu0
    %1060 = vmatpush.bf16.msra.mxu0 %v773
    %1061 = vmatpush.bf16.msra.mxu0 %v757
    %1062 = vmatpush.bf16.msra.mxu0 %v741
    %1063 = vmatpush.bf16.msra.mxu0 %v725
    %1064 = vmatpush.bf16.msra.mxu0 %v709
    %1065 = vmatpush.bf16.msra.mxu0 %v693
    %1066 = vmatpush.bf16.msra.mxu0 %v677
    %1067 = vmatpush.bf16.msra.mxu0 %v661
    %1068 = vmatmul.bf16.gmra.mxu0 %v264
    %v1069 = vpop.f32.mrf.mxu0
    %v1070 = vadd.f32 %v239, %v1069
    %v1071 = vpop.f32.mrf.mxu0
    %v1072 = vadd.f32 %v239, %v1071
    %1073 = vdwg.mxu0
    %1074 = vmatpush.bf16.msra.mxu0 %v774
    %1075 = vmatpush.bf16.msra.mxu0 %v758
    %1076 = vmatpush.bf16.msra.mxu0 %v742
    %1077 = vmatpush.bf16.msra.mxu0 %v726
    %1078 = vmatpush.bf16.msra.mxu0 %v710
    %1079 = vmatpush.bf16.msra.mxu0 %v694
    %1080 = vmatpush.bf16.msra.mxu0 %v678
    %1081 = vmatpush.bf16.msra.mxu0 %v662
    %1082 = vmatmul.bf16.gmra.mxu0 %v264
    %v1083 = vpop.f32.mrf.mxu0
    %v1084 = vadd.f32 %v240, %v1083
    %v1085 = vpop.f32.mrf.mxu0
    %v1086 = vadd.f32 %v240, %v1085
    %1087 = vdwg.mxu0
    %1088 = vmatpush.bf16.msra.mxu0 %v775
    %1089 = vmatpush.bf16.msra.mxu0 %v759
    %1090 = vmatpush.bf16.msra.mxu0 %v743
    %1091 = vmatpush.bf16.msra.mxu0 %v727
    %1092 = vmatpush.bf16.msra.mxu0 %v711
    %1093 = vmatpush.bf16.msra.mxu0 %v695
    %1094 = vmatpush.bf16.msra.mxu0 %v679
    %1095 = vmatpush.bf16.msra.mxu0 %v663
    %1096 = vmatmul.bf16.gmra.mxu0 %v264
    %v1097 = vpop.f32.mrf.mxu0
    %v1098 = vadd.f32 %v241, %v1097
    %v1099 = vpop.f32.mrf.mxu0
    %v1100 = vadd.f32 %v241, %v1099
    %1101 = vdwg.mxu0
    %1102 = vmatpush.bf16.msra.mxu0 %v776
    %1103 = vmatpush.bf16.msra.mxu0 %v760
    %1104 = vmatpush.bf16.msra.mxu0 %v744
    %1105 = vmatpush.bf16.msra.mxu0 %v728
    %1106 = vmatpush.bf16.msra.mxu0 %v712
    %1107 = vmatpush.bf16.msra.mxu0 %v696
    %1108 = vmatpush.bf16.msra.mxu0 %v680
    %1109 = vmatpush.bf16.msra.mxu0 %v664
    %1110 = vmatmul.bf16.gmra.mxu0 %v264
    %v1111 = vpop.f32.mrf.mxu0
    %v1112 = vadd.f32 %v242, %v1111
    %v1113 = vpop.f32.mrf.mxu0
    %v1114 = vadd.f32 %v242, %v1113
    %1115 = vdwg.mxu0
    %1116 = vmatpush.bf16.msra.mxu0 %v777
    %1117 = vmatpush.bf16.msra.mxu0 %v761
    %1118 = vmatpush.bf16.msra.mxu0 %v745
    %1119 = vmatpush.bf16.msra.mxu0 %v729
    %1120 = vmatpush.bf16.msra.mxu0 %v713
    %1121 = vmatpush.bf16.msra.mxu0 %v697
    %1122 = vmatpush.bf16.msra.mxu0 %v681
    %1123 = vmatpush.bf16.msra.mxu0 %v665
    %1124 = vmatmul.bf16.gmra.mxu0 %v264
    %v1125 = vpop.f32.mrf.mxu0
    %v1126 = vadd.f32 %v243, %v1125
    %v1127 = vpop.f32.mrf.mxu0
    %v1128 = vadd.f32 %v243, %v1127
    %1129 = vdwg.mxu0
    %v1130 = vmax.f32 %v916, 0.0
    %v1131 = vmax.f32 %v930, 0.0
    %v1132 = vmax.f32 %v944, 0.0
    %v1133 = vmax.f32 %v958, 0.0
    %v1134 = vmax.f32 %v972, 0.0
    %v1135 = vmax.f32 %v986, 0.0
    %v1136 = vmax.f32 %v1000, 0.0
    %v1137 = vmax.f32 %v1014, 0.0
    %v1138 = vmax.f32 %v1028, 0.0
    %v1139 = vmax.f32 %v1042, 0.0
    %v1140 = vmax.f32 %v1056, 0.0
    %v1141 = vmax.f32 %v1070, 0.0
    %v1142 = vmax.f32 %v1084, 0.0
    %v1143 = vmax.f32 %v1098, 0.0
    %v1144 = vmax.f32 %v1112, 0.0
    %v1145 = vmax.f32 %v1126, 0.0
    %v1146 = vmax.f32 %v918, 0.0
    %v1147 = vmax.f32 %v932, 0.0
    %v1148 = vmax.f32 %v946, 0.0
    %v1149 = vmax.f32 %v960, 0.0
    %v1150 = vmax.f32 %v974, 0.0
    %v1151 = vmax.f32 %v988, 0.0
    %v1152 = vmax.f32 %v1002, 0.0
    %v1153 = vmax.f32 %v1016, 0.0
    %v1154 = vmax.f32 %v1030, 0.0
    %v1155 = vmax.f32 %v1044, 0.0
    %v1156 = vmax.f32 %v1058, 0.0
    %v1157 = vmax.f32 %v1072, 0.0
    %v1158 = vmax.f32 %v1086, 0.0
    %v1159 = vmax.f32 %v1100, 0.0
    %v1160 = vmax.f32 %v1114, 0.0
    %v1161 = vmax.f32 %v1128, 0.0
    %v1162 = vld [vmem:[#allocation2] sm:$0xff]
    %v1163 = vld [vmem:[#allocation2 + $0x8] sm:$0xff]
    %v1164 = vpack.c.bf16 %v1146, %v1130
    %v1165 = vpack.c.bf16 %v1147, %v1131
    %v1166 = vpack.c.bf16 %v1148, %v1132
    %v1167 = vpack.c.bf16 %v1149, %v1133
    %v1168 = vpack.c.bf16 %v1150, %v1134
    %v1169 = vpack.c.bf16 %v1151, %v1135
    %v1170 = vpack.c.bf16 %v1152, %v1136
    %v1171 = vpack.c.bf16 %v1153, %v1137
    %v1172 = vpack.c.bf16 %v1154, %v1138
    %v1173 = vpack.c.bf16 %v1155, %v1139
    %v1174 = vpack.c.bf16 %v1156, %v1140
    %v1175 = vpack.c.bf16 %v1157, %v1141
    %v1176 = vpack.c.bf16 %v1158, %v1142
    %v1177 = vpack.c.bf16 %v1159, %v1143
    %v1178 = vpack.c.bf16 %v1160, %v1144
    %v1179 = vpack.c.bf16 %v1161, %v1145
    %v1180 = vld [vmem:[#allocation9] sm:$0xf]
    %v1181 = vld [vmem:[#allocation9 + $0x4] sm:$0xf]
    %v1182 = vld [vmem:[#allocation9 + $0x8] sm:$0xf]
    %v1183 = vld [vmem:[#allocation9 + $0xc] sm:$0xf]
    %v1184 = vld [vmem:[#allocation9 + $0x10] sm:$0xf]
    %v1185 = vld [vmem:[#allocation9 + $0x14] sm:$0xf]
    %v1186 = vld [vmem:[#allocation9 + $0x18] sm:$0xf]
    %v1187 = vld [vmem:[#allocation9 + $0x1c] sm:$0xf]
    %v1188 = vld [vmem:[#allocation9 + $0x20] sm:$0xf]
    %v1189 = vld [vmem:[#allocation9 + $0x24] sm:$0xf]
    %v1190 = vld [vmem:[#allocation9 + $0x28] sm:$0xf]
    %v1191 = vld [vmem:[#allocation9 + $0x2c] sm:$0xf]
    %v1192 = vld [vmem:[#allocation9 + $0x30] sm:$0xf]
    %v1193 = vld [vmem:[#allocation9 + $0x34] sm:$0xf]
    %v1194 = vld [vmem:[#allocation9 + $0x38] sm:$0xf]
    %v1195 = vld [vmem:[#allocation9 + $0x3c] sm:$0xf]
    %v1196 = vld [vmem:[#allocation9 + $0x40] sm:$0xf]
    %v1197 = vld [vmem:[#allocation9 + $0x44] sm:$0xf]
    %v1198 = vld [vmem:[#allocation9 + $0x48] sm:$0xf]
    %v1199 = vld [vmem:[#allocation9 + $0x4c] sm:$0xf]
    %v1200 = vld [vmem:[#allocation9 + $0x50] sm:$0xf]
    %v1201 = vld [vmem:[#allocation9 + $0x54] sm:$0xf]
    %v1202 = vld [vmem:[#allocation9 + $0x58] sm:$0xf]
    %v1203 = vld [vmem:[#allocation9 + $0x5c] sm:$0xf]
    %v1204 = vld [vmem:[#allocation9 + $0x60] sm:$0xf]
    %v1205 = vld [vmem:[#allocation9 + $0x64] sm:$0xf]
    %v1206 = vld [vmem:[#allocation9 + $0x68] sm:$0xf]
    %v1207 = vld [vmem:[#allocation9 + $0x6c] sm:$0xf]
    %v1208 = vld [vmem:[#allocation9 + $0x70] sm:$0xf]
    %v1209 = vld [vmem:[#allocation9 + $0x74] sm:$0xf]
    %v1210 = vld [vmem:[#allocation9 + $0x78] sm:$0xf]
    %v1211 = vld [vmem:[#allocation9 + $0x7c] sm:$0xf]
    %v1212 = vld [vmem:[#allocation9 + $0x80] sm:$0xf]
    %v1213 = vld [vmem:[#allocation9 + $0x84] sm:$0xf]
    %v1214 = vld [vmem:[#allocation9 + $0x88] sm:$0xf]
    %v1215 = vld [vmem:[#allocation9 + $0x8c] sm:$0xf]
    %v1216 = vld [vmem:[#allocation9 + $0x90] sm:$0xf]
    %v1217 = vld [vmem:[#allocation9 + $0x94] sm:$0xf]
    %v1218 = vld [vmem:[#allocation9 + $0x98] sm:$0xf]
    %v1219 = vld [vmem:[#allocation9 + $0x9c] sm:$0xf]
    %v1220 = vld [vmem:[#allocation9 + $0xa0] sm:$0xf]
    %v1221 = vld [vmem:[#allocation9 + $0xa4] sm:$0xf]
    %v1222 = vld [vmem:[#allocation9 + $0xa8] sm:$0xf]
    %v1223 = vld [vmem:[#allocation9 + $0xac] sm:$0xf]
    %v1224 = vld [vmem:[#allocation9 + $0xb0] sm:$0xf]
    %v1225 = vld [vmem:[#allocation9 + $0xb4] sm:$0xf]
    %v1226 = vld [vmem:[#allocation9 + $0xb8] sm:$0xf]
    %v1227 = vld [vmem:[#allocation9 + $0xbc] sm:$0xf]
    %v1228 = vld [vmem:[#allocation9 + $0xc0] sm:$0xf]
    %v1229 = vld [vmem:[#allocation9 + $0xc4] sm:$0xf]
    %v1230 = vld [vmem:[#allocation9 + $0xc8] sm:$0xf]
    %v1231 = vld [vmem:[#allocation9 + $0xcc] sm:$0xf]
    %v1232 = vld [vmem:[#allocation9 + $0xd0] sm:$0xf]
    %v1233 = vld [vmem:[#allocation9 + $0xd4] sm:$0xf]
    %v1234 = vld [vmem:[#allocation9 + $0xd8] sm:$0xf]
    %v1235 = vld [vmem:[#allocation9 + $0xdc] sm:$0xf]
    %v1236 = vld [vmem:[#allocation9 + $0xe0] sm:$0xf]
    %v1237 = vld [vmem:[#allocation9 + $0xe4] sm:$0xf]
    %v1238 = vld [vmem:[#allocation9 + $0xe8] sm:$0xf]
    %v1239 = vld [vmem:[#allocation9 + $0xec] sm:$0xf]
    %v1240 = vld [vmem:[#allocation9 + $0xf0] sm:$0xf]
    %v1241 = vld [vmem:[#allocation9 + $0xf4] sm:$0xf]
    %v1242 = vld [vmem:[#allocation9 + $0xf8] sm:$0xf]
    %v1243 = vld [vmem:[#allocation9 + $0xfc] sm:$0xf]
    %v1244 = vld [vmem:[#allocation9 + $0x100] sm:$0xf]
    %v1245 = vld [vmem:[#allocation9 + $0x104] sm:$0xf]
    %v1246 = vld [vmem:[#allocation9 + $0x108] sm:$0xf]
    %v1247 = vld [vmem:[#allocation9 + $0x10c] sm:$0xf]
    %v1248 = vld [vmem:[#allocation9 + $0x110] sm:$0xf]
    %v1249 = vld [vmem:[#allocation9 + $0x114] sm:$0xf]
    %v1250 = vld [vmem:[#allocation9 + $0x118] sm:$0xf]
    %v1251 = vld [vmem:[#allocation9 + $0x11c] sm:$0xf]
    %v1252 = vld [vmem:[#allocation9 + $0x120] sm:$0xf]
    %v1253 = vld [vmem:[#allocation9 + $0x124] sm:$0xf]
    %v1254 = vld [vmem:[#allocation9 + $0x128] sm:$0xf]
    %v1255 = vld [vmem:[#allocation9 + $0x12c] sm:$0xf]
    %v1256 = vld [vmem:[#allocation9 + $0x130] sm:$0xf]
    %v1257 = vld [vmem:[#allocation9 + $0x134] sm:$0xf]
    %v1258 = vld [vmem:[#allocation9 + $0x138] sm:$0xf]
    %v1259 = vld [vmem:[#allocation9 + $0x13c] sm:$0xf]
    %v1260 = vld [vmem:[#allocation9 + $0x140] sm:$0xf]
    %v1261 = vld [vmem:[#allocation9 + $0x144] sm:$0xf]
    %v1262 = vld [vmem:[#allocation9 + $0x148] sm:$0xf]
    %v1263 = vld [vmem:[#allocation9 + $0x14c] sm:$0xf]
    %v1264 = vld [vmem:[#allocation9 + $0x150] sm:$0xf]
    %v1265 = vld [vmem:[#allocation9 + $0x154] sm:$0xf]
    %v1266 = vld [vmem:[#allocation9 + $0x158] sm:$0xf]
    %v1267 = vld [vmem:[#allocation9 + $0x15c] sm:$0xf]
    %v1268 = vld [vmem:[#allocation9 + $0x160] sm:$0xf]
    %v1269 = vld [vmem:[#allocation9 + $0x164] sm:$0xf]
    %v1270 = vld [vmem:[#allocation9 + $0x168] sm:$0xf]
    %v1271 = vld [vmem:[#allocation9 + $0x16c] sm:$0xf]
    %v1272 = vld [vmem:[#allocation9 + $0x170] sm:$0xf]
    %v1273 = vld [vmem:[#allocation9 + $0x174] sm:$0xf]
    %v1274 = vld [vmem:[#allocation9 + $0x178] sm:$0xf]
    %v1275 = vld [vmem:[#allocation9 + $0x17c] sm:$0xf]
    %v1276 = vld [vmem:[#allocation9 + $0x180] sm:$0xf]
    %v1277 = vld [vmem:[#allocation9 + $0x184] sm:$0xf]
    %v1278 = vld [vmem:[#allocation9 + $0x188] sm:$0xf]
    %v1279 = vld [vmem:[#allocation9 + $0x18c] sm:$0xf]
    %v1280 = vld [vmem:[#allocation9 + $0x190] sm:$0xf]
    %v1281 = vld [vmem:[#allocation9 + $0x194] sm:$0xf]
    %v1282 = vld [vmem:[#allocation9 + $0x198] sm:$0xf]
    %v1283 = vld [vmem:[#allocation9 + $0x19c] sm:$0xf]
    %v1284 = vld [vmem:[#allocation9 + $0x1a0] sm:$0xf]
    %v1285 = vld [vmem:[#allocation9 + $0x1a4] sm:$0xf]
    %v1286 = vld [vmem:[#allocation9 + $0x1a8] sm:$0xf]
    %v1287 = vld [vmem:[#allocation9 + $0x1ac] sm:$0xf]
    %v1288 = vld [vmem:[#allocation9 + $0x1b0] sm:$0xf]
    %v1289 = vld [vmem:[#allocation9 + $0x1b4] sm:$0xf]
    %v1290 = vld [vmem:[#allocation9 + $0x1b8] sm:$0xf]
    %v1291 = vld [vmem:[#allocation9 + $0x1bc] sm:$0xf]
    %v1292 = vld [vmem:[#allocation9 + $0x1c0] sm:$0xf]
    %v1293 = vld [vmem:[#allocation9 + $0x1c4] sm:$0xf]
    %v1294 = vld [vmem:[#allocation9 + $0x1c8] sm:$0xf]
    %v1295 = vld [vmem:[#allocation9 + $0x1cc] sm:$0xf]
    %v1296 = vld [vmem:[#allocation9 + $0x1d0] sm:$0xf]
    %v1297 = vld [vmem:[#allocation9 + $0x1d4] sm:$0xf]
    %v1298 = vld [vmem:[#allocation9 + $0x1d8] sm:$0xf]
    %v1299 = vld [vmem:[#allocation9 + $0x1dc] sm:$0xf]
    %v1300 = vld [vmem:[#allocation9 + $0x1e0] sm:$0xf]
    %v1301 = vld [vmem:[#allocation9 + $0x1e4] sm:$0xf]
    %v1302 = vld [vmem:[#allocation9 + $0x1e8] sm:$0xf]
    %v1303 = vld [vmem:[#allocation9 + $0x1ec] sm:$0xf]
    %v1304 = vld [vmem:[#allocation9 + $0x1f0] sm:$0xf]
    %v1305 = vld [vmem:[#allocation9 + $0x1f4] sm:$0xf]
    %v1306 = vld [vmem:[#allocation9 + $0x1f8] sm:$0xf]
    %v1307 = vld [vmem:[#allocation9 + $0x1fc] sm:$0xf]
    %v1308 = vld [vmem:[#allocation9 + $0x200] sm:$0xf]
    %v1309 = vld [vmem:[#allocation9 + $0x204] sm:$0xf]
    %v1310 = vld [vmem:[#allocation9 + $0x208] sm:$0xf]
    %v1311 = vld [vmem:[#allocation9 + $0x20c] sm:$0xf]
    %v1312 = vld [vmem:[#allocation9 + $0x210] sm:$0xf]
    %v1313 = vld [vmem:[#allocation9 + $0x214] sm:$0xf]
    %v1314 = vld [vmem:[#allocation9 + $0x218] sm:$0xf]
    %v1315 = vld [vmem:[#allocation9 + $0x21c] sm:$0xf]
    %v1316 = vld [vmem:[#allocation9 + $0x220] sm:$0xf]
    %v1317 = vld [vmem:[#allocation9 + $0x224] sm:$0xf]
    %v1318 = vld [vmem:[#allocation9 + $0x228] sm:$0xf]
    %v1319 = vld [vmem:[#allocation9 + $0x22c] sm:$0xf]
    %v1320 = vld [vmem:[#allocation9 + $0x230] sm:$0xf]
    %v1321 = vld [vmem:[#allocation9 + $0x234] sm:$0xf]
    %v1322 = vld [vmem:[#allocation9 + $0x238] sm:$0xf]
    %v1323 = vld [vmem:[#allocation9 + $0x23c] sm:$0xf]
    %v1324 = vld [vmem:[#allocation9 + $0x240] sm:$0xf]
    %v1325 = vld [vmem:[#allocation9 + $0x244] sm:$0xf]
    %v1326 = vld [vmem:[#allocation9 + $0x248] sm:$0xf]
    %v1327 = vld [vmem:[#allocation9 + $0x24c] sm:$0xf]
    %v1328 = vld [vmem:[#allocation9 + $0x250] sm:$0xf]
    %v1329 = vld [vmem:[#allocation9 + $0x254] sm:$0xf]
    %v1330 = vld [vmem:[#allocation9 + $0x258] sm:$0xf]
    %v1331 = vld [vmem:[#allocation9 + $0x25c] sm:$0xf]
    %v1332 = vld [vmem:[#allocation9 + $0x260] sm:$0xf]
    %v1333 = vld [vmem:[#allocation9 + $0x264] sm:$0xf]
    %v1334 = vld [vmem:[#allocation9 + $0x268] sm:$0xf]
    %v1335 = vld [vmem:[#allocation9 + $0x26c] sm:$0xf]
    %v1336 = vld [vmem:[#allocation9 + $0x270] sm:$0xf]
    %v1337 = vld [vmem:[#allocation9 + $0x274] sm:$0xf]
    %v1338 = vld [vmem:[#allocation9 + $0x278] sm:$0xf]
    %v1339 = vld [vmem:[#allocation9 + $0x27c] sm:$0xf]
    %v1340 = vld [vmem:[#allocation9 + $0x280] sm:$0xf]
    %v1341 = vld [vmem:[#allocation9 + $0x284] sm:$0xf]
    %v1342 = vld [vmem:[#allocation9 + $0x288] sm:$0xf]
    %v1343 = vld [vmem:[#allocation9 + $0x28c] sm:$0xf]
    %v1344 = vld [vmem:[#allocation9 + $0x290] sm:$0xf]
    %v1345 = vld [vmem:[#allocation9 + $0x294] sm:$0xf]
    %v1346 = vld [vmem:[#allocation9 + $0x298] sm:$0xf]
    %v1347 = vld [vmem:[#allocation9 + $0x29c] sm:$0xf]
    %v1348 = vld [vmem:[#allocation9 + $0x2a0] sm:$0xf]
    %v1349 = vld [vmem:[#allocation9 + $0x2a4] sm:$0xf]
    %v1350 = vld [vmem:[#allocation9 + $0x2a8] sm:$0xf]
    %v1351 = vld [vmem:[#allocation9 + $0x2ac] sm:$0xf]
    %v1352 = vld [vmem:[#allocation9 + $0x2b0] sm:$0xf]
    %v1353 = vld [vmem:[#allocation9 + $0x2b4] sm:$0xf]
    %v1354 = vld [vmem:[#allocation9 + $0x2b8] sm:$0xf]
    %v1355 = vld [vmem:[#allocation9 + $0x2bc] sm:$0xf]
    %v1356 = vld [vmem:[#allocation9 + $0x2c0] sm:$0xf]
    %v1357 = vld [vmem:[#allocation9 + $0x2c4] sm:$0xf]
    %v1358 = vld [vmem:[#allocation9 + $0x2c8] sm:$0xf]
    %v1359 = vld [vmem:[#allocation9 + $0x2cc] sm:$0xf]
    %v1360 = vld [vmem:[#allocation9 + $0x2d0] sm:$0xf]
    %v1361 = vld [vmem:[#allocation9 + $0x2d4] sm:$0xf]
    %v1362 = vld [vmem:[#allocation9 + $0x2d8] sm:$0xf]
    %v1363 = vld [vmem:[#allocation9 + $0x2dc] sm:$0xf]
    %v1364 = vld [vmem:[#allocation9 + $0x2e0] sm:$0xf]
    %v1365 = vld [vmem:[#allocation9 + $0x2e4] sm:$0xf]
    %v1366 = vld [vmem:[#allocation9 + $0x2e8] sm:$0xf]
    %v1367 = vld [vmem:[#allocation9 + $0x2ec] sm:$0xf]
    %v1368 = vld [vmem:[#allocation9 + $0x2f0] sm:$0xf]
    %v1369 = vld [vmem:[#allocation9 + $0x2f4] sm:$0xf]
    %v1370 = vld [vmem:[#allocation9 + $0x2f8] sm:$0xf]
    %v1371 = vld [vmem:[#allocation9 + $0x2fc] sm:$0xf]
    %v1372 = vld [vmem:[#allocation9 + $0x300] sm:$0xf]
    %v1373 = vld [vmem:[#allocation9 + $0x304] sm:$0xf]
    %v1374 = vld [vmem:[#allocation9 + $0x308] sm:$0xf]
    %v1375 = vld [vmem:[#allocation9 + $0x30c] sm:$0xf]
    %v1376 = vld [vmem:[#allocation9 + $0x310] sm:$0xf]
    %v1377 = vld [vmem:[#allocation9 + $0x314] sm:$0xf]
    %v1378 = vld [vmem:[#allocation9 + $0x318] sm:$0xf]
    %v1379 = vld [vmem:[#allocation9 + $0x31c] sm:$0xf]
    %v1380 = vld [vmem:[#allocation9 + $0x320] sm:$0xf]
    %v1381 = vld [vmem:[#allocation9 + $0x324] sm:$0xf]
    %v1382 = vld [vmem:[#allocation9 + $0x328] sm:$0xf]
    %v1383 = vld [vmem:[#allocation9 + $0x32c] sm:$0xf]
    %v1384 = vld [vmem:[#allocation9 + $0x330] sm:$0xf]
    %v1385 = vld [vmem:[#allocation9 + $0x334] sm:$0xf]
    %v1386 = vld [vmem:[#allocation9 + $0x338] sm:$0xf]
    %v1387 = vld [vmem:[#allocation9 + $0x33c] sm:$0xf]
    %v1388 = vld [vmem:[#allocation9 + $0x340] sm:$0xf]
    %v1389 = vld [vmem:[#allocation9 + $0x344] sm:$0xf]
    %v1390 = vld [vmem:[#allocation9 + $0x348] sm:$0xf]
    %v1391 = vld [vmem:[#allocation9 + $0x34c] sm:$0xf]
    %v1392 = vld [vmem:[#allocation9 + $0x350] sm:$0xf]
    %v1393 = vld [vmem:[#allocation9 + $0x354] sm:$0xf]
    %v1394 = vld [vmem:[#allocation9 + $0x358] sm:$0xf]
    %v1395 = vld [vmem:[#allocation9 + $0x35c] sm:$0xf]
    %v1396 = vld [vmem:[#allocation9 + $0x360] sm:$0xf]
    %v1397 = vld [vmem:[#allocation9 + $0x364] sm:$0xf]
    %v1398 = vld [vmem:[#allocation9 + $0x368] sm:$0xf]
    %v1399 = vld [vmem:[#allocation9 + $0x36c] sm:$0xf]
    %v1400 = vld [vmem:[#allocation9 + $0x370] sm:$0xf]
    %v1401 = vld [vmem:[#allocation9 + $0x374] sm:$0xf]
    %v1402 = vld [vmem:[#allocation9 + $0x378] sm:$0xf]
    %v1403 = vld [vmem:[#allocation9 + $0x37c] sm:$0xf]
    %v1404 = vld [vmem:[#allocation9 + $0x380] sm:$0xf]
    %v1405 = vld [vmem:[#allocation9 + $0x384] sm:$0xf]
    %v1406 = vld [vmem:[#allocation9 + $0x388] sm:$0xf]
    %v1407 = vld [vmem:[#allocation9 + $0x38c] sm:$0xf]
    %v1408 = vld [vmem:[#allocation9 + $0x390] sm:$0xf]
    %v1409 = vld [vmem:[#allocation9 + $0x394] sm:$0xf]
    %v1410 = vld [vmem:[#allocation9 + $0x398] sm:$0xf]
    %v1411 = vld [vmem:[#allocation9 + $0x39c] sm:$0xf]
    %v1412 = vld [vmem:[#allocation9 + $0x3a0] sm:$0xf]
    %v1413 = vld [vmem:[#allocation9 + $0x3a4] sm:$0xf]
    %v1414 = vld [vmem:[#allocation9 + $0x3a8] sm:$0xf]
    %v1415 = vld [vmem:[#allocation9 + $0x3ac] sm:$0xf]
    %v1416 = vld [vmem:[#allocation9 + $0x3b0] sm:$0xf]
    %v1417 = vld [vmem:[#allocation9 + $0x3b4] sm:$0xf]
    %v1418 = vld [vmem:[#allocation9 + $0x3b8] sm:$0xf]
    %v1419 = vld [vmem:[#allocation9 + $0x3bc] sm:$0xf]
    %v1420 = vld [vmem:[#allocation9 + $0x3c0] sm:$0xf]
    %v1421 = vld [vmem:[#allocation9 + $0x3c4] sm:$0xf]
    %v1422 = vld [vmem:[#allocation9 + $0x3c8] sm:$0xf]
    %v1423 = vld [vmem:[#allocation9 + $0x3cc] sm:$0xf]
    %v1424 = vld [vmem:[#allocation9 + $0x3d0] sm:$0xf]
    %v1425 = vld [vmem:[#allocation9 + $0x3d4] sm:$0xf]
    %v1426 = vld [vmem:[#allocation9 + $0x3d8] sm:$0xf]
    %v1427 = vld [vmem:[#allocation9 + $0x3dc] sm:$0xf]
    %v1428 = vld [vmem:[#allocation9 + $0x3e0] sm:$0xf]
    %v1429 = vld [vmem:[#allocation9 + $0x3e4] sm:$0xf]
    %v1430 = vld [vmem:[#allocation9 + $0x3e8] sm:$0xf]
    %v1431 = vld [vmem:[#allocation9 + $0x3ec] sm:$0xf]
    %v1432 = vld [vmem:[#allocation9 + $0x3f0] sm:$0xf]
    %v1433 = vld [vmem:[#allocation9 + $0x3f4] sm:$0xf]
    %v1434 = vld [vmem:[#allocation9 + $0x3f8] sm:$0xf]
    %v1435 = vld [vmem:[#allocation9 + $0x3fc] sm:$0xf]
    %v1692 = vunpack.c.l.b16 %v1180
    %v1693 = vunpack.c.l.b16 %v1181
    %v1694 = vunpack.c.l.b16 %v1182
    %v1695 = vunpack.c.l.b16 %v1183
    %v1696 = vunpack.c.l.b16 %v1184
    %v1697 = vunpack.c.l.b16 %v1185
    %v1698 = vunpack.c.l.b16 %v1186
    %v1699 = vunpack.c.l.b16 %v1187
    %v1700 = vunpack.c.l.b16 %v1188
    %v1701 = vunpack.c.l.b16 %v1189
    %v1702 = vunpack.c.l.b16 %v1190
    %v1703 = vunpack.c.l.b16 %v1191
    %v1704 = vunpack.c.l.b16 %v1192
    %v1705 = vunpack.c.l.b16 %v1193
    %v1706 = vunpack.c.l.b16 %v1194
    %v1707 = vunpack.c.l.b16 %v1195
    %v1708 = vunpack.c.l.b16 %v1196
    %v1709 = vunpack.c.l.b16 %v1197
    %v1710 = vunpack.c.l.b16 %v1198
    %v1711 = vunpack.c.l.b16 %v1199
    %v1712 = vunpack.c.l.b16 %v1200
    %v1713 = vunpack.c.l.b16 %v1201
    %v1714 = vunpack.c.l.b16 %v1202
    %v1715 = vunpack.c.l.b16 %v1203
    %v1716 = vunpack.c.l.b16 %v1204
    %v1717 = vunpack.c.l.b16 %v1205
    %v1718 = vunpack.c.l.b16 %v1206
    %v1719 = vunpack.c.l.b16 %v1207
    %v1720 = vunpack.c.l.b16 %v1208
    %v1721 = vunpack.c.l.b16 %v1209
    %v1722 = vunpack.c.l.b16 %v1210
    %v1723 = vunpack.c.l.b16 %v1211
    %v1724 = vunpack.c.l.b16 %v1212
    %v1725 = vunpack.c.l.b16 %v1213
    %v1726 = vunpack.c.l.b16 %v1214
    %v1727 = vunpack.c.l.b16 %v1215
    %v1728 = vunpack.c.l.b16 %v1216
    %v1729 = vunpack.c.l.b16 %v1217
    %v1730 = vunpack.c.l.b16 %v1218
    %v1731 = vunpack.c.l.b16 %v1219
    %v1732 = vunpack.c.l.b16 %v1220
    %v1733 = vunpack.c.l.b16 %v1221
    %v1734 = vunpack.c.l.b16 %v1222
    %v1735 = vunpack.c.l.b16 %v1223
    %v1736 = vunpack.c.l.b16 %v1224
    %v1737 = vunpack.c.l.b16 %v1225
    %v1738 = vunpack.c.l.b16 %v1226
    %v1739 = vunpack.c.l.b16 %v1227
    %v1740 = vunpack.c.l.b16 %v1228
    %v1741 = vunpack.c.l.b16 %v1229
    %v1742 = vunpack.c.l.b16 %v1230
    %v1743 = vunpack.c.l.b16 %v1231
    %v1744 = vunpack.c.l.b16 %v1232
    %v1745 = vunpack.c.l.b16 %v1233
    %v1746 = vunpack.c.l.b16 %v1234
    %v1747 = vunpack.c.l.b16 %v1235
    %v1748 = vunpack.c.l.b16 %v1236
    %v1749 = vunpack.c.l.b16 %v1237
    %v1750 = vunpack.c.l.b16 %v1238
    %v1751 = vunpack.c.l.b16 %v1239
    %v1752 = vunpack.c.l.b16 %v1240
    %v1753 = vunpack.c.l.b16 %v1241
    %v1754 = vunpack.c.l.b16 %v1242
    %v1755 = vunpack.c.l.b16 %v1243
    %v1756 = vunpack.c.l.b16 %v1244
    %v1757 = vunpack.c.l.b16 %v1245
    %v1758 = vunpack.c.l.b16 %v1246
    %v1759 = vunpack.c.l.b16 %v1247
    %v1760 = vunpack.c.l.b16 %v1248
    %v1761 = vunpack.c.l.b16 %v1249
    %v1762 = vunpack.c.l.b16 %v1250
    %v1763 = vunpack.c.l.b16 %v1251
    %v1764 = vunpack.c.l.b16 %v1252
    %v1765 = vunpack.c.l.b16 %v1253
    %v1766 = vunpack.c.l.b16 %v1254
    %v1767 = vunpack.c.l.b16 %v1255
    %v1768 = vunpack.c.l.b16 %v1256
    %v1769 = vunpack.c.l.b16 %v1257
    %v1770 = vunpack.c.l.b16 %v1258
    %v1771 = vunpack.c.l.b16 %v1259
    %v1772 = vunpack.c.l.b16 %v1260
    %v1773 = vunpack.c.l.b16 %v1261
    %v1774 = vunpack.c.l.b16 %v1262
    %v1775 = vunpack.c.l.b16 %v1263
    %v1776 = vunpack.c.l.b16 %v1264
    %v1777 = vunpack.c.l.b16 %v1265
    %v1778 = vunpack.c.l.b16 %v1266
    %v1779 = vunpack.c.l.b16 %v1267
    %v1780 = vunpack.c.l.b16 %v1268
    %v1781 = vunpack.c.l.b16 %v1269
    %v1782 = vunpack.c.l.b16 %v1270
    %v1783 = vunpack.c.l.b16 %v1271
    %v1784 = vunpack.c.l.b16 %v1272
    %v1785 = vunpack.c.l.b16 %v1273
    %v1786 = vunpack.c.l.b16 %v1274
    %v1787 = vunpack.c.l.b16 %v1275
    %v1788 = vunpack.c.l.b16 %v1276
    %v1789 = vunpack.c.l.b16 %v1277
    %v1790 = vunpack.c.l.b16 %v1278
    %v1791 = vunpack.c.l.b16 %v1279
    %v1792 = vunpack.c.l.b16 %v1280
    %v1793 = vunpack.c.l.b16 %v1281
    %v1794 = vunpack.c.l.b16 %v1282
    %v1795 = vunpack.c.l.b16 %v1283
    %v1796 = vunpack.c.l.b16 %v1284
    %v1797 = vunpack.c.l.b16 %v1285
    %v1798 = vunpack.c.l.b16 %v1286
    %v1799 = vunpack.c.l.b16 %v1287
    %v1800 = vunpack.c.l.b16 %v1288
    %v1801 = vunpack.c.l.b16 %v1289
    %v1802 = vunpack.c.l.b16 %v1290
    %v1803 = vunpack.c.l.b16 %v1291
    %v1804 = vunpack.c.l.b16 %v1292
    %v1805 = vunpack.c.l.b16 %v1293
    %v1806 = vunpack.c.l.b16 %v1294
    %v1807 = vunpack.c.l.b16 %v1295
    %v1808 = vunpack.c.l.b16 %v1296
    %v1809 = vunpack.c.l.b16 %v1297
    %v1810 = vunpack.c.l.b16 %v1298
    %v1811 = vunpack.c.l.b16 %v1299
    %v1812 = vunpack.c.l.b16 %v1300
    %v1813 = vunpack.c.l.b16 %v1301
    %v1814 = vunpack.c.l.b16 %v1302
    %v1815 = vunpack.c.l.b16 %v1303
    %v1816 = vunpack.c.l.b16 %v1304
    %v1817 = vunpack.c.l.b16 %v1305
    %v1818 = vunpack.c.l.b16 %v1306
    %v1819 = vunpack.c.l.b16 %v1307
    %v1820 = vunpack.c.l.b16 %v1308
    %v1821 = vunpack.c.l.b16 %v1309
    %v1822 = vunpack.c.l.b16 %v1310
    %v1823 = vunpack.c.l.b16 %v1311
    %v1824 = vunpack.c.l.b16 %v1312
    %v1825 = vunpack.c.l.b16 %v1313
    %v1826 = vunpack.c.l.b16 %v1314
    %v1827 = vunpack.c.l.b16 %v1315
    %v1828 = vunpack.c.l.b16 %v1316
    %v1829 = vunpack.c.l.b16 %v1317
    %v1830 = vunpack.c.l.b16 %v1318
    %v1831 = vunpack.c.l.b16 %v1319
    %v1832 = vunpack.c.l.b16 %v1320
    %v1833 = vunpack.c.l.b16 %v1321
    %v1834 = vunpack.c.l.b16 %v1322
    %v1835 = vunpack.c.l.b16 %v1323
    %v1836 = vunpack.c.l.b16 %v1324
    %v1837 = vunpack.c.l.b16 %v1325
    %v1838 = vunpack.c.l.b16 %v1326
    %v1839 = vunpack.c.l.b16 %v1327
    %v1840 = vunpack.c.l.b16 %v1328
    %v1841 = vunpack.c.l.b16 %v1329
    %v1842 = vunpack.c.l.b16 %v1330
    %v1843 = vunpack.c.l.b16 %v1331
    %v1844 = vunpack.c.l.b16 %v1332
    %v1845 = vunpack.c.l.b16 %v1333
    %v1846 = vunpack.c.l.b16 %v1334
    %v1847 = vunpack.c.l.b16 %v1335
    %v1848 = vunpack.c.l.b16 %v1336
    %v1849 = vunpack.c.l.b16 %v1337
    %v1850 = vunpack.c.l.b16 %v1338
    %v1851 = vunpack.c.l.b16 %v1339
    %v1852 = vunpack.c.l.b16 %v1340
    %v1853 = vunpack.c.l.b16 %v1341
    %v1854 = vunpack.c.l.b16 %v1342
    %v1855 = vunpack.c.l.b16 %v1343
    %v1856 = vunpack.c.l.b16 %v1344
    %v1857 = vunpack.c.l.b16 %v1345
    %v1858 = vunpack.c.l.b16 %v1346
    %v1859 = vunpack.c.l.b16 %v1347
    %v1860 = vunpack.c.l.b16 %v1348
    %v1861 = vunpack.c.l.b16 %v1349
    %v1862 = vunpack.c.l.b16 %v1350
    %v1863 = vunpack.c.l.b16 %v1351
    %v1864 = vunpack.c.l.b16 %v1352
    %v1865 = vunpack.c.l.b16 %v1353
    %v1866 = vunpack.c.l.b16 %v1354
    %v1867 = vunpack.c.l.b16 %v1355
    %v1868 = vunpack.c.l.b16 %v1356
    %v1869 = vunpack.c.l.b16 %v1357
    %v1870 = vunpack.c.l.b16 %v1358
    %v1871 = vunpack.c.l.b16 %v1359
    %v1872 = vunpack.c.l.b16 %v1360
    %v1873 = vunpack.c.l.b16 %v1361
    %v1874 = vunpack.c.l.b16 %v1362
    %v1875 = vunpack.c.l.b16 %v1363
    %v1876 = vunpack.c.l.b16 %v1364
    %v1877 = vunpack.c.l.b16 %v1365
    %v1878 = vunpack.c.l.b16 %v1366
    %v1879 = vunpack.c.l.b16 %v1367
    %v1880 = vunpack.c.l.b16 %v1368
    %v1881 = vunpack.c.l.b16 %v1369
    %v1882 = vunpack.c.l.b16 %v1370
    %v1883 = vunpack.c.l.b16 %v1371
    %v1884 = vunpack.c.l.b16 %v1372
    %v1885 = vunpack.c.l.b16 %v1373
    %v1886 = vunpack.c.l.b16 %v1374
    %v1887 = vunpack.c.l.b16 %v1375
    %v1888 = vunpack.c.l.b16 %v1376
    %v1889 = vunpack.c.l.b16 %v1377
    %v1890 = vunpack.c.l.b16 %v1378
    %v1891 = vunpack.c.l.b16 %v1379
    %v1892 = vunpack.c.l.b16 %v1380
    %v1893 = vunpack.c.l.b16 %v1381
    %v1894 = vunpack.c.l.b16 %v1382
    %v1895 = vunpack.c.l.b16 %v1383
    %v1896 = vunpack.c.l.b16 %v1384
    %v1897 = vunpack.c.l.b16 %v1385
    %v1898 = vunpack.c.l.b16 %v1386
    %v1899 = vunpack.c.l.b16 %v1387
    %v1900 = vunpack.c.l.b16 %v1388
    %v1901 = vunpack.c.l.b16 %v1389
    %v1902 = vunpack.c.l.b16 %v1390
    %v1903 = vunpack.c.l.b16 %v1391
    %v1904 = vunpack.c.l.b16 %v1392
    %v1905 = vunpack.c.l.b16 %v1393
    %v1906 = vunpack.c.l.b16 %v1394
    %v1907 = vunpack.c.l.b16 %v1395
    %v1908 = vunpack.c.l.b16 %v1396
    %v1909 = vunpack.c.l.b16 %v1397
    %v1910 = vunpack.c.l.b16 %v1398
    %v1911 = vunpack.c.l.b16 %v1399
    %v1912 = vunpack.c.l.b16 %v1400
    %v1913 = vunpack.c.l.b16 %v1401
    %v1914 = vunpack.c.l.b16 %v1402
    %v1915 = vunpack.c.l.b16 %v1403
    %v1916 = vunpack.c.l.b16 %v1404
    %v1917 = vunpack.c.l.b16 %v1405
    %v1918 = vunpack.c.l.b16 %v1406
    %v1919 = vunpack.c.l.b16 %v1407
    %v1920 = vunpack.c.l.b16 %v1408
    %v1921 = vunpack.c.l.b16 %v1409
    %v1922 = vunpack.c.l.b16 %v1410
    %v1923 = vunpack.c.l.b16 %v1411
    %v1924 = vunpack.c.l.b16 %v1412
    %v1925 = vunpack.c.l.b16 %v1413
    %v1926 = vunpack.c.l.b16 %v1414
    %v1927 = vunpack.c.l.b16 %v1415
    %v1928 = vunpack.c.l.b16 %v1416
    %v1929 = vunpack.c.l.b16 %v1417
    %v1930 = vunpack.c.l.b16 %v1418
    %v1931 = vunpack.c.l.b16 %v1419
    %v1932 = vunpack.c.l.b16 %v1420
    %v1933 = vunpack.c.l.b16 %v1421
    %v1934 = vunpack.c.l.b16 %v1422
    %v1935 = vunpack.c.l.b16 %v1423
    %v1936 = vunpack.c.l.b16 %v1424
    %v1937 = vunpack.c.l.b16 %v1425
    %v1938 = vunpack.c.l.b16 %v1426
    %v1939 = vunpack.c.l.b16 %v1427
    %v1940 = vunpack.c.l.b16 %v1428
    %v1941 = vunpack.c.l.b16 %v1429
    %v1942 = vunpack.c.l.b16 %v1430
    %v1943 = vunpack.c.l.b16 %v1431
    %v1944 = vunpack.c.l.b16 %v1432
    %v1945 = vunpack.c.l.b16 %v1433
    %v1946 = vunpack.c.l.b16 %v1434
    %v1947 = vunpack.c.l.b16 %v1435
    %v1948 = vpack.c.b16 %v1693, %v1692
    %v1949 = vpack.c.b16 %v1695, %v1694
    %v1950 = vpack.c.b16 %v1697, %v1696
    %v1951 = vpack.c.b16 %v1699, %v1698
    %v1952 = vpack.c.b16 %v1701, %v1700
    %v1953 = vpack.c.b16 %v1703, %v1702
    %v1954 = vpack.c.b16 %v1705, %v1704
    %v1955 = vpack.c.b16 %v1707, %v1706
    %v1956 = vpack.c.b16 %v1709, %v1708
    %v1957 = vpack.c.b16 %v1711, %v1710
    %v1958 = vpack.c.b16 %v1713, %v1712
    %v1959 = vpack.c.b16 %v1715, %v1714
    %v1960 = vpack.c.b16 %v1717, %v1716
    %v1961 = vpack.c.b16 %v1719, %v1718
    %v1962 = vpack.c.b16 %v1721, %v1720
    %v1963 = vpack.c.b16 %v1723, %v1722
    %v1964 = vpack.c.b16 %v1725, %v1724
    %v1965 = vpack.c.b16 %v1727, %v1726
    %v1966 = vpack.c.b16 %v1729, %v1728
    %v1967 = vpack.c.b16 %v1731, %v1730
    %v1968 = vpack.c.b16 %v1733, %v1732
    %v1969 = vpack.c.b16 %v1735, %v1734
    %v1970 = vpack.c.b16 %v1737, %v1736
    %v1971 = vpack.c.b16 %v1739, %v1738
    %v1972 = vpack.c.b16 %v1741, %v1740
    %v1973 = vpack.c.b16 %v1743, %v1742
    %v1974 = vpack.c.b16 %v1745, %v1744
    %v1975 = vpack.c.b16 %v1747, %v1746
    %v1976 = vpack.c.b16 %v1749, %v1748
    %v1977 = vpack.c.b16 %v1751, %v1750
    %v1978 = vpack.c.b16 %v1753, %v1752
    %v1979 = vpack.c.b16 %v1755, %v1754
    %v1980 = vpack.c.b16 %v1757, %v1756
    %v1981 = vpack.c.b16 %v1759, %v1758
    %v1982 = vpack.c.b16 %v1761, %v1760
    %v1983 = vpack.c.b16 %v1763, %v1762
    %v1984 = vpack.c.b16 %v1765, %v1764
    %v1985 = vpack.c.b16 %v1767, %v1766
    %v1986 = vpack.c.b16 %v1769, %v1768
    %v1987 = vpack.c.b16 %v1771, %v1770
    %v1988 = vpack.c.b16 %v1773, %v1772
    %v1989 = vpack.c.b16 %v1775, %v1774
    %v1990 = vpack.c.b16 %v1777, %v1776
    %v1991 = vpack.c.b16 %v1779, %v1778
    %v1992 = vpack.c.b16 %v1781, %v1780
    %v1993 = vpack.c.b16 %v1783, %v1782
    %v1994 = vpack.c.b16 %v1785, %v1784
    %v1995 = vpack.c.b16 %v1787, %v1786
    %v1996 = vpack.c.b16 %v1789, %v1788
    %v1997 = vpack.c.b16 %v1791, %v1790
    %v1998 = vpack.c.b16 %v1793, %v1792
    %v1999 = vpack.c.b16 %v1795, %v1794
    %v2000 = vpack.c.b16 %v1797, %v1796
    %v2001 = vpack.c.b16 %v1799, %v1798
    %v2002 = vpack.c.b16 %v1801, %v1800
    %v2003 = vpack.c.b16 %v1803, %v1802
    %v2004 = vpack.c.b16 %v1805, %v1804
    %v2005 = vpack.c.b16 %v1807, %v1806
    %v2006 = vpack.c.b16 %v1809, %v1808
    %v2007 = vpack.c.b16 %v1811, %v1810
    %v2008 = vpack.c.b16 %v1813, %v1812
    %v2009 = vpack.c.b16 %v1815, %v1814
    %v2010 = vpack.c.b16 %v1817, %v1816
    %v2011 = vpack.c.b16 %v1819, %v1818
    %v2012 = vpack.c.b16 %v1821, %v1820
    %v2013 = vpack.c.b16 %v1823, %v1822
    %v2014 = vpack.c.b16 %v1825, %v1824
    %v2015 = vpack.c.b16 %v1827, %v1826
    %v2016 = vpack.c.b16 %v1829, %v1828
    %v2017 = vpack.c.b16 %v1831, %v1830
    %v2018 = vpack.c.b16 %v1833, %v1832
    %v2019 = vpack.c.b16 %v1835, %v1834
    %v2020 = vpack.c.b16 %v1837, %v1836
    %v2021 = vpack.c.b16 %v1839, %v1838
    %v2022 = vpack.c.b16 %v1841, %v1840
    %v2023 = vpack.c.b16 %v1843, %v1842
    %v2024 = vpack.c.b16 %v1845, %v1844
    %v2025 = vpack.c.b16 %v1847, %v1846
    %v2026 = vpack.c.b16 %v1849, %v1848
    %v2027 = vpack.c.b16 %v1851, %v1850
    %v2028 = vpack.c.b16 %v1853, %v1852
    %v2029 = vpack.c.b16 %v1855, %v1854
    %v2030 = vpack.c.b16 %v1857, %v1856
    %v2031 = vpack.c.b16 %v1859, %v1858
    %v2032 = vpack.c.b16 %v1861, %v1860
    %v2033 = vpack.c.b16 %v1863, %v1862
    %v2034 = vpack.c.b16 %v1865, %v1864
    %v2035 = vpack.c.b16 %v1867, %v1866
    %v2036 = vpack.c.b16 %v1869, %v1868
    %v2037 = vpack.c.b16 %v1871, %v1870
    %v2038 = vpack.c.b16 %v1873, %v1872
    %v2039 = vpack.c.b16 %v1875, %v1874
    %v2040 = vpack.c.b16 %v1877, %v1876
    %v2041 = vpack.c.b16 %v1879, %v1878
    %v2042 = vpack.c.b16 %v1881, %v1880
    %v2043 = vpack.c.b16 %v1883, %v1882
    %v2044 = vpack.c.b16 %v1885, %v1884
    %v2045 = vpack.c.b16 %v1887, %v1886
    %v2046 = vpack.c.b16 %v1889, %v1888
    %v2047 = vpack.c.b16 %v1891, %v1890
    %v2048 = vpack.c.b16 %v1893, %v1892
    %v2049 = vpack.c.b16 %v1895, %v1894
    %v2050 = vpack.c.b16 %v1897, %v1896
    %v2051 = vpack.c.b16 %v1899, %v1898
    %v2052 = vpack.c.b16 %v1901, %v1900
    %v2053 = vpack.c.b16 %v1903, %v1902
    %v2054 = vpack.c.b16 %v1905, %v1904
    %v2055 = vpack.c.b16 %v1907, %v1906
    %v2056 = vpack.c.b16 %v1909, %v1908
    %v2057 = vpack.c.b16 %v1911, %v1910
    %v2058 = vpack.c.b16 %v1913, %v1912
    %v2059 = vpack.c.b16 %v1915, %v1914
    %v2060 = vpack.c.b16 %v1917, %v1916
    %v2061 = vpack.c.b16 %v1919, %v1918
    %v2062 = vpack.c.b16 %v1921, %v1920
    %v2063 = vpack.c.b16 %v1923, %v1922
    %v2064 = vpack.c.b16 %v1925, %v1924
    %v2065 = vpack.c.b16 %v1927, %v1926
    %v2066 = vpack.c.b16 %v1929, %v1928
    %v2067 = vpack.c.b16 %v1931, %v1930
    %v2068 = vpack.c.b16 %v1933, %v1932
    %v2069 = vpack.c.b16 %v1935, %v1934
    %v2070 = vpack.c.b16 %v1937, %v1936
    %v2071 = vpack.c.b16 %v1939, %v1938
    %v2072 = vpack.c.b16 %v1941, %v1940
    %v2073 = vpack.c.b16 %v1943, %v1942
    %v2074 = vpack.c.b16 %v1945, %v1944
    %v2075 = vpack.c.b16 %v1947, %v1946
    %2204 = vmatpush.bf16.msra.mxu0 %v1955
    %2205 = vmatpush.bf16.msra.mxu0 %v1954
    %2206 = vmatpush.bf16.msra.mxu0 %v1953
    %2207 = vmatpush.bf16.msra.mxu0 %v1952
    %2208 = vmatpush.bf16.msra.mxu0 %v1951
    %2209 = vmatpush.bf16.msra.mxu0 %v1950
    %2210 = vmatpush.bf16.msra.mxu0 %v1949
    %2211 = vmatpush.bf16.msra.mxu0 %v1948
    %2212 = vmatmul.bf16.gmra.mxu0 %v1164
    %v2213 = vpop.f32.mrf.mxu0
    %v2214 = vadd.f32 0.0, %v2213
    %v2215 = vpop.f32.mrf.mxu0
    %v2216 = vadd.f32 0.0, %v2215
    %2217 = vdwg.mxu0
    %2218 = vmatpush.bf16.msra.mxu0 %v1963
    %2219 = vmatpush.bf16.msra.mxu0 %v1962
    %2220 = vmatpush.bf16.msra.mxu0 %v1961
    %2221 = vmatpush.bf16.msra.mxu0 %v1960
    %2222 = vmatpush.bf16.msra.mxu0 %v1959
    %2223 = vmatpush.bf16.msra.mxu0 %v1958
    %2224 = vmatpush.bf16.msra.mxu0 %v1957
    %2225 = vmatpush.bf16.msra.mxu0 %v1956
    %2226 = vmatmul.bf16.gmra.mxu0 %v1165
    %v2227 = vpop.f32.mrf.mxu0
    %v2228 = vadd.f32 %v2214, %v2227
    %v2229 = vpop.f32.mrf.mxu0
    %v2230 = vadd.f32 %v2216, %v2229
    %2231 = vdwg.mxu0
    %2232 = vmatpush.bf16.msra.mxu0 %v1971
    %2233 = vmatpush.bf16.msra.mxu0 %v1970
    %2234 = vmatpush.bf16.msra.mxu0 %v1969
    %2235 = vmatpush.bf16.msra.mxu0 %v1968
    %2236 = vmatpush.bf16.msra.mxu0 %v1967
    %2237 = vmatpush.bf16.msra.mxu0 %v1966
    %2238 = vmatpush.bf16.msra.mxu0 %v1965
    %2239 = vmatpush.bf16.msra.mxu0 %v1964
    %2240 = vmatmul.bf16.gmra.mxu0 %v1166
    %v2241 = vpop.f32.mrf.mxu0
    %v2242 = vadd.f32 %v2228, %v2241
    %v2243 = vpop.f32.mrf.mxu0
    %v2244 = vadd.f32 %v2230, %v2243
    %2245 = vdwg.mxu0
    %2246 = vmatpush.bf16.msra.mxu0 %v1979
    %2247 = vmatpush.bf16.msra.mxu0 %v1978
    %2248 = vmatpush.bf16.msra.mxu0 %v1977
    %2249 = vmatpush.bf16.msra.mxu0 %v1976
    %2250 = vmatpush.bf16.msra.mxu0 %v1975
    %2251 = vmatpush.bf16.msra.mxu0 %v1974
    %2252 = vmatpush.bf16.msra.mxu0 %v1973
    %2253 = vmatpush.bf16.msra.mxu0 %v1972
    %2254 = vmatmul.bf16.gmra.mxu0 %v1167
    %v2255 = vpop.f32.mrf.mxu0
    %v2256 = vadd.f32 %v2242, %v2255
    %v2257 = vpop.f32.mrf.mxu0
    %v2258 = vadd.f32 %v2244, %v2257
    %2259 = vdwg.mxu0
    %2260 = vmatpush.bf16.msra.mxu0 %v1987
    %2261 = vmatpush.bf16.msra.mxu0 %v1986
    %2262 = vmatpush.bf16.msra.mxu0 %v1985
    %2263 = vmatpush.bf16.msra.mxu0 %v1984
    %2264 = vmatpush.bf16.msra.mxu0 %v1983
    %2265 = vmatpush.bf16.msra.mxu0 %v1982
    %2266 = vmatpush.bf16.msra.mxu0 %v1981
    %2267 = vmatpush.bf16.msra.mxu0 %v1980
    %2268 = vmatmul.bf16.gmra.mxu0 %v1168
    %v2269 = vpop.f32.mrf.mxu0
    %v2270 = vadd.f32 %v2256, %v2269
    %v2271 = vpop.f32.mrf.mxu0
    %v2272 = vadd.f32 %v2258, %v2271
    %2273 = vdwg.mxu0
    %2274 = vmatpush.bf16.msra.mxu0 %v1995
    %2275 = vmatpush.bf16.msra.mxu0 %v1994
    %2276 = vmatpush.bf16.msra.mxu0 %v1993
    %2277 = vmatpush.bf16.msra.mxu0 %v1992
    %2278 = vmatpush.bf16.msra.mxu0 %v1991
    %2279 = vmatpush.bf16.msra.mxu0 %v1990
    %2280 = vmatpush.bf16.msra.mxu0 %v1989
    %2281 = vmatpush.bf16.msra.mxu0 %v1988
    %2282 = vmatmul.bf16.gmra.mxu0 %v1169
    %v2283 = vpop.f32.mrf.mxu0
    %v2284 = vadd.f32 %v2270, %v2283
    %v2285 = vpop.f32.mrf.mxu0
    %v2286 = vadd.f32 %v2272, %v2285
    %2287 = vdwg.mxu0
    %2288 = vmatpush.bf16.msra.mxu0 %v2003
    %2289 = vmatpush.bf16.msra.mxu0 %v2002
    %2290 = vmatpush.bf16.msra.mxu0 %v2001
    %2291 = vmatpush.bf16.msra.mxu0 %v2000
    %2292 = vmatpush.bf16.msra.mxu0 %v1999
    %2293 = vmatpush.bf16.msra.mxu0 %v1998
    %2294 = vmatpush.bf16.msra.mxu0 %v1997
    %2295 = vmatpush.bf16.msra.mxu0 %v1996
    %2296 = vmatmul.bf16.gmra.mxu0 %v1170
    %v2297 = vpop.f32.mrf.mxu0
    %v2298 = vadd.f32 %v2284, %v2297
    %v2299 = vpop.f32.mrf.mxu0
    %v2300 = vadd.f32 %v2286, %v2299
    %2301 = vdwg.mxu0
    %2302 = vmatpush.bf16.msra.mxu0 %v2011
    %2303 = vmatpush.bf16.msra.mxu0 %v2010
    %2304 = vmatpush.bf16.msra.mxu0 %v2009
    %2305 = vmatpush.bf16.msra.mxu0 %v2008
    %2306 = vmatpush.bf16.msra.mxu0 %v2007
    %2307 = vmatpush.bf16.msra.mxu0 %v2006
    %2308 = vmatpush.bf16.msra.mxu0 %v2005
    %2309 = vmatpush.bf16.msra.mxu0 %v2004
    %2310 = vmatmul.bf16.gmra.mxu0 %v1171
    %v2311 = vpop.f32.mrf.mxu0
    %v2312 = vadd.f32 %v2298, %v2311
    %v2313 = vpop.f32.mrf.mxu0
    %v2314 = vadd.f32 %v2300, %v2313
    %2315 = vdwg.mxu0
    %2316 = vmatpush.bf16.msra.mxu0 %v2019
    %2317 = vmatpush.bf16.msra.mxu0 %v2018
    %2318 = vmatpush.bf16.msra.mxu0 %v2017
    %2319 = vmatpush.bf16.msra.mxu0 %v2016
    %2320 = vmatpush.bf16.msra.mxu0 %v2015
    %2321 = vmatpush.bf16.msra.mxu0 %v2014
    %2322 = vmatpush.bf16.msra.mxu0 %v2013
    %2323 = vmatpush.bf16.msra.mxu0 %v2012
    %2324 = vmatmul.bf16.gmra.mxu0 %v1172
    %v2325 = vpop.f32.mrf.mxu0
    %v2326 = vadd.f32 %v2312, %v2325
    %v2327 = vpop.f32.mrf.mxu0
    %v2328 = vadd.f32 %v2314, %v2327
    %2329 = vdwg.mxu0
    %2330 = vmatpush.bf16.msra.mxu0 %v2027
    %2331 = vmatpush.bf16.msra.mxu0 %v2026
    %2332 = vmatpush.bf16.msra.mxu0 %v2025
    %2333 = vmatpush.bf16.msra.mxu0 %v2024
    %2334 = vmatpush.bf16.msra.mxu0 %v2023
    %2335 = vmatpush.bf16.msra.mxu0 %v2022
    %2336 = vmatpush.bf16.msra.mxu0 %v2021
    %2337 = vmatpush.bf16.msra.mxu0 %v2020
    %2338 = vmatmul.bf16.gmra.mxu0 %v1173
    %v2339 = vpop.f32.mrf.mxu0
    %v2340 = vadd.f32 %v2326, %v2339
    %v2341 = vpop.f32.mrf.mxu0
    %v2342 = vadd.f32 %v2328, %v2341
    %2343 = vdwg.mxu0
    %2344 = vmatpush.bf16.msra.mxu0 %v2035
    %2345 = vmatpush.bf16.msra.mxu0 %v2034
    %2346 = vmatpush.bf16.msra.mxu0 %v2033
    %2347 = vmatpush.bf16.msra.mxu0 %v2032
    %2348 = vmatpush.bf16.msra.mxu0 %v2031
    %2349 = vmatpush.bf16.msra.mxu0 %v2030
    %2350 = vmatpush.bf16.msra.mxu0 %v2029
    %2351 = vmatpush.bf16.msra.mxu0 %v2028
    %2352 = vmatmul.bf16.gmra.mxu0 %v1174
    %v2353 = vpop.f32.mrf.mxu0
    %v2354 = vadd.f32 %v2340, %v2353
    %v2355 = vpop.f32.mrf.mxu0
    %v2356 = vadd.f32 %v2342, %v2355
    %2357 = vdwg.mxu0
    %2358 = vmatpush.bf16.msra.mxu0 %v2043
    %2359 = vmatpush.bf16.msra.mxu0 %v2042
    %2360 = vmatpush.bf16.msra.mxu0 %v2041
    %2361 = vmatpush.bf16.msra.mxu0 %v2040
    %2362 = vmatpush.bf16.msra.mxu0 %v2039
    %2363 = vmatpush.bf16.msra.mxu0 %v2038
    %2364 = vmatpush.bf16.msra.mxu0 %v2037
    %2365 = vmatpush.bf16.msra.mxu0 %v2036
    %2366 = vmatmul.bf16.gmra.mxu0 %v1175
    %v2367 = vpop.f32.mrf.mxu0
    %v2368 = vadd.f32 %v2354, %v2367
    %v2369 = vpop.f32.mrf.mxu0
    %v2370 = vadd.f32 %v2356, %v2369
    %2371 = vdwg.mxu0
    %2372 = vmatpush.bf16.msra.mxu0 %v2051
    %2373 = vmatpush.bf16.msra.mxu0 %v2050
    %2374 = vmatpush.bf16.msra.mxu0 %v2049
    %2375 = vmatpush.bf16.msra.mxu0 %v2048
    %2376 = vmatpush.bf16.msra.mxu0 %v2047
    %2377 = vmatpush.bf16.msra.mxu0 %v2046
    %2378 = vmatpush.bf16.msra.mxu0 %v2045
    %2379 = vmatpush.bf16.msra.mxu0 %v2044
    %2380 = vmatmul.bf16.gmra.mxu0 %v1176
    %v2381 = vpop.f32.mrf.mxu0
    %v2382 = vadd.f32 %v2368, %v2381
    %v2383 = vpop.f32.mrf.mxu0
    %v2384 = vadd.f32 %v2370, %v2383
    %2385 = vdwg.mxu0
    %2386 = vmatpush.bf16.msra.mxu0 %v2059
    %2387 = vmatpush.bf16.msra.mxu0 %v2058
    %2388 = vmatpush.bf16.msra.mxu0 %v2057
    %2389 = vmatpush.bf16.msra.mxu0 %v2056
    %2390 = vmatpush.bf16.msra.mxu0 %v2055
    %2391 = vmatpush.bf16.msra.mxu0 %v2054
    %2392 = vmatpush.bf16.msra.mxu0 %v2053
    %2393 = vmatpush.bf16.msra.mxu0 %v2052
    %2394 = vmatmul.bf16.gmra.mxu0 %v1177
    %v2395 = vpop.f32.mrf.mxu0
    %v2396 = vadd.f32 %v2382, %v2395
    %v2397 = vpop.f32.mrf.mxu0
    %v2398 = vadd.f32 %v2384, %v2397
    %2399 = vdwg.mxu0
    %2400 = vmatpush.bf16.msra.mxu0 %v2067
    %2401 = vmatpush.bf16.msra.mxu0 %v2066
    %2402 = vmatpush.bf16.msra.mxu0 %v2065
    %2403 = vmatpush.bf16.msra.mxu0 %v2064
    %2404 = vmatpush.bf16.msra.mxu0 %v2063
    %2405 = vmatpush.bf16.msra.mxu0 %v2062
    %2406 = vmatpush.bf16.msra.mxu0 %v2061
    %2407 = vmatpush.bf16.msra.mxu0 %v2060
    %2408 = vmatmul.bf16.gmra.mxu0 %v1178
    %v2409 = vpop.f32.mrf.mxu0
    %v2410 = vadd.f32 %v2396, %v2409
    %v2411 = vpop.f32.mrf.mxu0
    %v2412 = vadd.f32 %v2398, %v2411
    %2413 = vdwg.mxu0
    %2414 = vmatpush.bf16.msra.mxu0 %v2075
    %2415 = vmatpush.bf16.msra.mxu0 %v2074
    %2416 = vmatpush.bf16.msra.mxu0 %v2073
    %2417 = vmatpush.bf16.msra.mxu0 %v2072
    %2418 = vmatpush.bf16.msra.mxu0 %v2071
    %2419 = vmatpush.bf16.msra.mxu0 %v2070
    %2420 = vmatpush.bf16.msra.mxu0 %v2069
    %2421 = vmatpush.bf16.msra.mxu0 %v2068
    %2422 = vmatmul.bf16.gmra.mxu0 %v1179
    %v2423 = vpop.f32.mrf.mxu0
    %v2424 = vadd.f32 %v2410, %v2423
    %v2425 = vpop.f32.mrf.mxu0
    %v2426 = vadd.f32 %v2412, %v2425
    %2427 = vdwg.mxu0
    %v2428 = vadd.f32 %v1162, %v2424
    %v2429 = vadd.f32 %v1163, %v2426
    %2430 = vst [vmem:[#allocation2] sm:$0xff] %v2428
    %2431 = vst [vmem:[#allocation2 + $0x8] sm:$0xff] %v2429
    // Predicated region
    $region42: #{feed_forward.1} parent=1 // pred_check
      %p2432 = pneg %p82
    $region43: #{feed_forward.1} parent=1 // pred_check_branch
      %2434 = sbr.rel (%p2432) target = $region45
    $region44: #{feed_forward.1} parent=1 // pred_region
      %v2435 = vld [vmem:[#allocation2] sm:$0xff]
      %v2436 = vld [vmem:[#allocation2 + $0x8] sm:$0xff]
      %v2437 = vpack.c.bf16 %v2435, %v2435
      %v2438 = vpack.c.bf16 %v2436, %v2436
      %2439 = vst [vmem:[#allocation11] sm:$0xf] %v2437
      %2440 = vst [vmem:[#allocation11 + $0x4] sm:$0xf] %v2438
    $region45: #{feed_forward.1} parent=1 // pred_fallthru
      _
    // Predicated region
    $region46: #{feed_forward.1} parent=1 // pred_check
      _
    $region47: #{feed_forward.1} parent=1 // pred_check_branch
      %2442 = sbr.rel (0) target = $region49
    $region48: #{feed_forward.1} parent=1 // pred_region
      %2444 = vsyncadd [#allocation5], 0
      %s2445 = sshll.u32 [#allocation11], 4
      %s2446 = int_to_ptr.vmem [resolvable:$true] %s2445
      %s2447 = sshll.u32 %s5, 4
      %s2448 = int_to_ptr.hbm [resolvable:$true] %s2447
      %2453 = dma.vmem_to_hbm [thread:$0]  %s2446, 128, %s2448, [#allocation5], 64, 64, 4
    $region49: #{feed_forward.1} parent=1 // pred_fallthru
      _
    // Predicated region
    $region50: #{feed_forward.1} parent=1 // pred_check
      _
    $region51: #{feed_forward.1} parent=1 // pred_check_branch
      %2455 = sbr.rel (0) target = $region53
    $region52: #{feed_forward.1} parent=1 // pred_region
      %2457 = dma.done [#allocation5], 128
    $region53: #{feed_forward.1} parent=1 // pred_fallthru
      _
    %2458 = vsyncpa [#allocation4], 1
    %2459 = vsyncpa [#allocation7], 1
    %2460 = vsyncpa [#allocation10], 1
    %2461 = vsyncpa [#allocation5], 1

</llo_original>
